<compile_context>
chip_gen: v5e
topology: v5e:2x2
jax: 0.10.0
libtpu: 0.0.40
codegen_flags: <defaults>
</compile_context>

<pallas_src>
import functools

import jax
import jax.numpy as jnp
from jax.experimental import pallas as pl
from jax.experimental.pallas import tpu as pltpu

FACTORS = [64, 32, 16, 8]
BN_EPS = 1e-5
NORM_EPS = 1e-12          # torch.nn.functional.normalize default eps

EMB = FACTORS[0]          # 64  embedding width per tower
K0 = 2 * FACTORS[0]       # 128 fused (user|item) input width
F1 = 2 * FACTORS[1]       # 64  fused layer-1 width
F2 = 2 * FACTORS[2]       # 32  fused layer-2 width
F3 = 2 * FACTORS[3]       # 16  fused layer-3 width


# ------------------------------- kernel ------------------------------------


def _dmf_kernel(uid_ref, iid_ref, utab_ref, itab_ref,
                w1_ref, w2_ref, w3_ref, b_ref, out_ref):
    uids = uid_ref[...]                   # (1, TB) int32
    iids = iid_ref[...]                   # (1, TB) int32
    nu = utab_ref.shape[1]                # padded table widths (multiples of 128)
    ni = itab_ref.shape[1]
    tb = uids.shape[1]

    # In-kernel embedding gather as a one-hot MXU matmul against the resident
    # feature-major tables.  Exact: only one column contributes per sample.
    u_oh = jnp.where(
        jax.lax.broadcasted_iota(jnp.int32, (nu, tb), 0) == uids, 1.0, 0.0)
    i_oh = jnp.where(
        jax.lax.broadcasted_iota(jnp.int32, (ni, tb), 0) == iids, 1.0, 0.0)
    xu = jnp.dot(utab_ref[...], u_oh, preferred_element_type=jnp.float32)  # (64, TB)
    xi = jnp.dot(itab_ref[...], i_oh, preferred_element_type=jnp.float32)  # (64, TB)
    x = jnp.concatenate([xu, xi], axis=0)                                  # (128, TB)

    b = b_ref[...]                        # (112, 1) packed biases (BN shifts folded)

    # Fused towers: block-diagonal weights -> each layer is ONE MXU matmul.
    h = jnp.dot(w1_ref[...], x, preferred_element_type=jnp.float32) + b[0:F1]
    h = jnp.maximum(h, 0.0)                                   # Linear1 + ReLU
    h = jnp.dot(w2_ref[...], h, preferred_element_type=jnp.float32) + b[F1:F1 + F2]
    h = jnp.maximum(h, 0.0)                                   # Linear2 (BN1 folded) + ReLU
    v = jnp.dot(w3_ref[...], h, preferred_element_type=jnp.float32) + b[F1 + F2:F1 + F2 + F3]
    # v: (16, TB); rows 0:8 = user vector, rows 8:16 = item vector.
    u = v[0:FACTORS[3], :]
    it = v[FACTORS[3]:F3, :]

    # F.normalize(p=2): x / max(||x||, eps)  ==  x * rsqrt(max(||x||^2, eps^2)).
    ssu = jnp.sum(u * u, axis=0, keepdims=True)               # (1, TB)
    ssi = jnp.sum(it * it, axis=0, keepdims=True)
    inv_u = jax.lax.rsqrt(jnp.maximum(ssu, NORM_EPS * NORM_EPS))
    inv_i = jax.lax.rsqrt(jnp.maximum(ssi, NORM_EPS * NORM_EPS))

    dot = jnp.sum(u * it, axis=0, keepdims=True)              # (1, TB)
    pred = dot * inv_u * inv_i
    # sigmoid via EUP tanh; lane-dense (1, TB) store.
    out_ref[...] = 0.5 * (jnp.tanh(0.5 * pred) + 1.0)


@functools.partial(jax.jit, static_argnames=("tb",))
def dmf_forward(user_ids, item_ids, utab_t, itab_t, w1, w2, w3, bias, *, tb=2048):
    """user_ids/item_ids: (B,) int ids.  utab_t/itab_t: (64, N_pad) f32
    feature-major embedding tables (lane-padded).  Returns (B,) predictions."""
    B = user_ids.shape[0]
    nb = pl.cdiv(B, tb)          # keep >= 2 on v7x so both TCs get work
    Bp = nb * tb

    uid = user_ids.astype(jnp.int32).reshape(1, B)
    iid = item_ids.astype(jnp.int32).reshape(1, B)
    if Bp != B:
        # Pad only the ids (4 B/sample each) with id 0; padded lanes are
        # computed and discarded by the final slice (no cross-lane reductions).
        uid = jnp.pad(uid, ((0, 0), (0, Bp - B)))
        iid = jnp.pad(iid, ((0, 0), (0, Bp - B)))

    nu, ni = utab_t.shape[1], itab_t.shape[1]
    flops = 2 * Bp * (EMB * (nu + ni) + F1 * K0 + F2 * F1 + F3 * F2) + 16 * Bp * F3
    bytes_accessed = (
        4 * (2 * Bp)                                   # ids in
        + 4 * Bp                                       # predictions out
        + 4 * int(utab_t.size + itab_t.size
                  + w1.size + w2.size + w3.size + bias.size))

    out = pl.pallas_call(
        _dmf_kernel,
        out_shape=jax.ShapeDtypeStruct((1, Bp), jnp.float32),
        grid_spec=pltpu.PrefetchScalarGridSpec(
            num_scalar_prefetch=0,
            grid=(nb,),
            in_specs=[
                pl.BlockSpec((1, tb), lambda b: (0, b)),         # user ids (batch-tiled)
                pl.BlockSpec((1, tb), lambda b: (0, b)),         # item ids (batch-tiled)
                pl.BlockSpec(utab_t.shape, lambda b: (0, 0)),    # resident user table
                pl.BlockSpec(itab_t.shape, lambda b: (0, 0)),    # resident item table
                pl.BlockSpec(w1.shape, lambda b: (0, 0)),        # fused weights
                pl.BlockSpec(w2.shape, lambda b: (0, 0)),
                pl.BlockSpec(w3.shape, lambda b: (0, 0)),
                pl.BlockSpec(bias.shape, lambda b: (0, 0)),      # packed biases
            ],
            out_specs=pl.BlockSpec((1, tb), lambda b: (0, b)),   # lane-dense output row
        ),
        compiler_params=pltpu.CompilerParams(
            dimension_semantics=("parallel",),
            vmem_limit_bytes=48 * 1024 * 1024,
        ),
        cost_estimate=pl.CostEstimate(
            flops=flops, transcendentals=3 * Bp, bytes_accessed=bytes_accessed),
    )(uid, iid, utab_t, itab_t, w1, w2, w3, bias)
    return out[0, :B]


# ----------------------- host-side parameter prep --------------------------


def xavier_uniform(key, out_f, in_f):
    bound = (6.0 / (in_f + out_f)) ** 0.5
    return jax.random.uniform(key, (out_f, in_f), jnp.float32, -bound, bound)


def make_tower_params(key):
    """Torch-layout params for one tower: Linear weights (out, in), BN stats."""
    f0, f1, f2, f3 = FACTORS
    ks = jax.random.split(key, 11)
    return dict(
        w1=xavier_uniform(ks[0], f1, f0), b1=jnp.zeros((f1,), jnp.float32),
        w2=xavier_uniform(ks[1], f2, f1), b2=jnp.zeros((f2,), jnp.float32),
        w3=xavier_uniform(ks[2], f3, f2), b3=jnp.zeros((f3,), jnp.float32),
        # BatchNorm1d affine + running stats. Randomized to emulate a trained
        # checkpoint (a fresh PyTorch init is gamma=1, beta=0, mean=0, var=1).
        g1=jax.random.uniform(ks[3], (f1,), jnp.float32, 0.5, 1.5),
        be1=0.1 * jax.random.normal(ks[4], (f1,), jnp.float32),
        m1=0.1 * jax.random.normal(ks[5], (f1,), jnp.float32),
        v1=jax.random.uniform(ks[6], (f1,), jnp.float32, 0.5, 1.5),
        g2=jax.random.uniform(ks[7], (f2,), jnp.float32, 0.5, 1.5),
        be2=0.1 * jax.random.normal(ks[8], (f2,), jnp.float32),
        m2=0.1 * jax.random.normal(ks[9], (f2,), jnp.float32),
        v2=jax.random.uniform(ks[10], (f2,), jnp.float32, 0.5, 1.5),
    )


def _fold_tower(p):
    """Fold eval-mode BatchNorm (after ReLU) into the following Linear layer."""
    s1 = p["g1"] / jnp.sqrt(p["v1"] + BN_EPS)
    sh1 = p["be1"] - p["m1"] * s1
    s2 = p["g2"] / jnp.sqrt(p["v2"] + BN_EPS)
    sh2 = p["be2"] - p["m2"] * s2
    w2f = p["w2"] * s1[None, :]
    # Fold shifts with an elementwise-multiply + f32 sum (avoids TPU matmul
    # default-precision surprises in the host-side fold).
    b2f = jnp.sum(p["w2"] * sh1[None, :], axis=1) + p["b2"]
    w3f = p["w3"] * s2[None, :]
    b3f = jnp.sum(p["w3"] * sh2[None, :], axis=1) + p["b3"]
    return (p["w1"], p["b1"]), (w2f, b2f), (w3f, b3f)


def _block_diag(a, b):
    out = jnp.zeros((a.shape[0] + b.shape[0], a.shape[1] + b.shape[1]), a.dtype)
    out = out.at[: a.shape[0], : a.shape[1]].set(a)
    out = out.at[a.shape[0]:, a.shape[1]:].set(b)
    return out


def fuse_towers(up, ip):
    """Fold BN + fuse user/item towers into block-diagonal weights + packed bias."""
    (uw1, ub1), (uw2, ub2), (uw3, ub3) = _fold_tower(up)
    (iw1, ib1), (iw2, ib2), (iw3, ib3) = _fold_tower(ip)
    w1 = _block_diag(uw1, iw1)   # (64, 128)
    w2 = _block_diag(uw2, iw2)   # (32, 64)
    w3 = _block_diag(uw3, iw3)   # (16, 32)
    bias = jnp.concatenate([ub1, ib1, ub2, ib2, ub3, ib3]).reshape(-1, 1)  # (112, 1)
    return w1, w2, w3, bias


def pad_table_t(table):
    """(N, 64) embedding table -> feature-major (64, N_pad), lane-padded to 128x."""
    n = table.shape[0]
    n_pad = ((n + 127) // 128) * 128
    t = table.T
    if n_pad != n:
        t = jnp.pad(t, ((0, 0), (0, n_pad - n)))
    return t


# ----------------------------- pure-JAX reference ---------------------------


def reference_forward(ue, ie, up, ip):
    hp = jax.lax.Precision.HIGHEST

    def bn(x, g, be, m, v):
        return (x - m) / jnp.sqrt(v + BN_EPS) * g + be

    def tower(x, p):
        h = jnp.maximum(jnp.dot(x, p["w1"].T, precision=hp) + p["b1"], 0.0)
        h = bn(h, p["g1"], p["be1"], p["m1"], p["v1"])
        h = jnp.maximum(jnp.dot(h, p["w2"].T, precision=hp) + p["b2"], 0.0)
        h = bn(h, p["g2"], p["be2"], p["m2"], p["v2"])
        return jnp.dot(h, p["w3"].T, precision=hp) + p["b3"]

    u = tower(ue, up)
    i = tower(ie, ip)
    u = u / jnp.maximum(jnp.linalg.norm(u, axis=1, keepdims=True), NORM_EPS)
    i = i / jnp.maximum(jnp.linalg.norm(i, axis=1, keepdims=True), NORM_EPS)
    return jax.nn.sigmoid(jnp.sum(u * i, axis=1))


if __name__ == "__main__":
    key = jax.random.PRNGKey(0)
    k_ut_tbl, k_it_tbl, k_up, k_ip, k_uid, k_iid = jax.random.split(key, 6)

    n_users, n_items, batch = 100, 200, 1000
    tb = 256  # small demo tile (production default is 2048); nb=4 grid steps

    # nn.Embedding default init: N(0, 1)
    user_table = jax.random.normal(k_ut_tbl, (n_users, FACTORS[0]), jnp.float32)
    item_table = jax.random.normal(k_it_tbl, (n_items, FACTORS[0]), jnp.float32)

    up = make_tower_params(k_up)
    ip = make_tower_params(k_ip)
    w1, w2, w3, bias = fuse_towers(up, ip)

    user_ids = jax.random.randint(k_uid, (batch,), 0, n_users)
    item_ids = jax.random.randint(k_iid, (batch,), 0, n_items)

    # Feature-major, lane-padded tables stay resident in VMEM inside the kernel.
    utab_t = pad_table_t(user_table)   # (64, 128)
    itab_t = pad_table_t(item_table)   # (64, 256)

    pred = dmf_forward(user_ids, item_ids, utab_t, itab_t, w1, w2, w3, bias, tb=tb)
    pred = jax.block_until_ready(pred)

    ref = reference_forward(user_table[user_ids], item_table[item_ids], up, ip)
    assert pred.shape == (batch,)
    max_err = float(jnp.max(jnp.abs(pred - ref)))
    # Tolerance deliberately 5e-4 (not 1e-4): kernel uses EUP rsqrt/tanh and MXU
    # f32 matmuls; outputs are sigmoid probabilities so 5e-4 abs is still tight.
    assert jnp.allclose(pred, ref, atol=5e-4, rtol=5e-4), max_err

    print("KERNEL_OK")
</pallas_src>

<mosaic_0001>
module attributes {stable_mosaic.version = 11 : i64} {
  func.func @_dmf_kernel(%arg0: i32, %arg1: memref<1x256xi32, #tpu.memory_space<vmem>>, %arg2: memref<1x256xi32, #tpu.memory_space<vmem>>, %arg3: memref<64x128xf32, #tpu.memory_space<vmem>>, %arg4: memref<64x256xf32, #tpu.memory_space<vmem>>, %arg5: memref<64x128xf32, #tpu.memory_space<vmem>>, %arg6: memref<32x64xf32, #tpu.memory_space<vmem>>, %arg7: memref<16x32xf32, #tpu.memory_space<vmem>>, %arg8: memref<112x1xf32, #tpu.memory_space<vmem>>, %arg9: memref<1x256xf32, #tpu.memory_space<vmem>>) attributes {dimension_semantics = [#tpu.dimension_semantics<parallel>], iteration_bounds = array<i64: 4>, scalar_prefetch = 0 : i64, scratch_operands = 0 : i64, tpu.core_type = #tpu.core_type<tc>, window_params = [{transform_indices = @transform_0, window_bounds = array<i64: 1, 256>}, {transform_indices = @transform_1, window_bounds = array<i64: 1, 256>}, {pipeline_mode = #tpu.pipeline_mode<synchronous>, transform_indices = @transform_2, window_bounds = array<i64: 64, 128>}, {pipeline_mode = #tpu.pipeline_mode<synchronous>, transform_indices = @transform_3, window_bounds = array<i64: 64, 256>}, {pipeline_mode = #tpu.pipeline_mode<synchronous>, transform_indices = @transform_4, window_bounds = array<i64: 64, 128>}, {pipeline_mode = #tpu.pipeline_mode<synchronous>, transform_indices = @transform_5, window_bounds = array<i64: 32, 64>}, {pipeline_mode = #tpu.pipeline_mode<synchronous>, transform_indices = @transform_6, window_bounds = array<i64: 16, 32>}, {pipeline_mode = #tpu.pipeline_mode<synchronous>, transform_indices = @transform_7, window_bounds = array<i64: 112, 1>}, {transform_indices = @transform_8, window_bounds = array<i64: 1, 256>}]} {
    %c0 = arith.constant 0 : index
    %c0_0 = arith.constant 0 : index
    %0 = vector.load %arg1[%c0, %c0_0] : memref<1x256xi32, #tpu.memory_space<vmem>>, vector<1x256xi32>
    %c0_1 = arith.constant 0 : index
    %c0_2 = arith.constant 0 : index
    %1 = vector.load %arg2[%c0_1, %c0_2] : memref<1x256xi32, #tpu.memory_space<vmem>>, vector<1x256xi32>
    %2 = tpu.iota {dimensions = array<i32: 0>} : vector<128x256xi32>
    %3 = vector.broadcast %0 : vector<1x256xi32> to vector<128x256xi32>
    %4 = arith.cmpi eq, %2, %3 : vector<128x256xi32>
    %cst = arith.constant 1.000000e+00 : f32
    %cst_3 = arith.constant 0.000000e+00 : f32
    %5 = vector.broadcast %cst : f32 to vector<128x256xf32>
    %6 = vector.broadcast %cst_3 : f32 to vector<128x256xf32>
    %7 = arith.select %4, %5, %6 : vector<128x256xi1>, vector<128x256xf32>
    %8 = tpu.iota {dimensions = array<i32: 0>} : vector<256x256xi32>
    %9 = vector.broadcast %1 : vector<1x256xi32> to vector<256x256xi32>
    %10 = arith.cmpi eq, %8, %9 : vector<256x256xi32>
    %cst_4 = arith.constant 1.000000e+00 : f32
    %cst_5 = arith.constant 0.000000e+00 : f32
    %11 = vector.broadcast %cst_4 : f32 to vector<256x256xf32>
    %12 = vector.broadcast %cst_5 : f32 to vector<256x256xf32>
    %13 = arith.select %10, %11, %12 : vector<256x256xi1>, vector<256x256xf32>
    %c0_6 = arith.constant 0 : index
    %c0_7 = arith.constant 0 : index
    %14 = vector.load %arg3[%c0_6, %c0_7] : memref<64x128xf32, #tpu.memory_space<vmem>>, vector<64x128xf32>
    %cst_8 = arith.constant dense<0.000000e+00> : vector<64x256xf32>
    %15 = tpu.matmul %14, %7, %cst_8 {dimension_numbers = #tpu.dot_dimension_numbers<[1], [0], [0], [1], [0, 0, 1, 1], [], []>} : vector<64x128xf32>, vector<128x256xf32>, vector<64x256xf32> -> vector<64x256xf32>
    %c0_9 = arith.constant 0 : index
    %c0_10 = arith.constant 0 : index
    %16 = vector.load %arg4[%c0_9, %c0_10] : memref<64x256xf32, #tpu.memory_space<vmem>>, vector<64x256xf32>
    %cst_11 = arith.constant dense<0.000000e+00> : vector<64x256xf32>
    %17 = tpu.matmul %16, %13, %cst_11 {dimension_numbers = #tpu.dot_dimension_numbers<[1], [0], [0], [1], [0, 0, 1, 1], [], []>} : vector<64x256xf32>, vector<256x256xf32>, vector<64x256xf32> -> vector<64x256xf32>
    %18 = tpu.concatenate %15, %17 in 0 : vector<64x256xf32>, vector<64x256xf32> -> vector<128x256xf32>
    %c0_12 = arith.constant 0 : index
    %c0_13 = arith.constant 0 : index
    %19 = vector.load %arg8[%c0_12, %c0_13] : memref<112x1xf32, #tpu.memory_space<vmem>>, vector<112x1xf32>
    %c0_14 = arith.constant 0 : index
    %c0_15 = arith.constant 0 : index
    %20 = vector.load %arg5[%c0_14, %c0_15] : memref<64x128xf32, #tpu.memory_space<vmem>>, vector<64x128xf32>
    %cst_16 = arith.constant dense<0.000000e+00> : vector<64x256xf32>
    %21 = tpu.matmul %20, %18, %cst_16 {dimension_numbers = #tpu.dot_dimension_numbers<[1], [0], [0], [1], [0, 0, 1, 1], [], []>} : vector<64x128xf32>, vector<128x256xf32>, vector<64x256xf32> -> vector<64x256xf32>
    %22 = vector.extract_strided_slice %19 {offsets = [0, 0], sizes = [64, 1], strides = [1, 1]} : vector<112x1xf32> to vector<64x1xf32>
    %23 = vector.broadcast %22 : vector<64x1xf32> to vector<64x256xf32>
    %24 = arith.addf %21, %23 : vector<64x256xf32>
    %cst_17 = arith.constant 0.000000e+00 : f32
    %25 = vector.broadcast %cst_17 : f32 to vector<64x256xf32>
    %26 = arith.maximumf %24, %25 : vector<64x256xf32>
    %c0_18 = arith.constant 0 : index
    %c0_19 = arith.constant 0 : index
    %27 = vector.load %arg6[%c0_18, %c0_19] : memref<32x64xf32, #tpu.memory_space<vmem>>, vector<32x64xf32>
    %cst_20 = arith.constant dense<0.000000e+00> : vector<32x256xf32>
    %28 = tpu.matmul %27, %26, %cst_20 {dimension_numbers = #tpu.dot_dimension_numbers<[1], [0], [0], [1], [0, 0, 1, 1], [], []>} : vector<32x64xf32>, vector<64x256xf32>, vector<32x256xf32> -> vector<32x256xf32>
    %29 = vector.extract_strided_slice %19 {offsets = [64, 0], sizes = [32, 1], strides = [1, 1]} : vector<112x1xf32> to vector<32x1xf32>
    %30 = vector.broadcast %29 : vector<32x1xf32> to vector<32x256xf32>
    %31 = arith.addf %28, %30 : vector<32x256xf32>
    %cst_21 = arith.constant 0.000000e+00 : f32
    %32 = vector.broadcast %cst_21 : f32 to vector<32x256xf32>
    %33 = arith.maximumf %31, %32 : vector<32x256xf32>
    %c0_22 = arith.constant 0 : index
    %c0_23 = arith.constant 0 : index
    %34 = vector.load %arg7[%c0_22, %c0_23] : memref<16x32xf32, #tpu.memory_space<vmem>>, vector<16x32xf32>
    %cst_24 = arith.constant dense<0.000000e+00> : vector<16x256xf32>
    %35 = tpu.matmul %34, %33, %cst_24 {dimension_numbers = #tpu.dot_dimension_numbers<[1], [0], [0], [1], [0, 0, 1, 1], [], []>} : vector<16x32xf32>, vector<32x256xf32>, vector<16x256xf32> -> vector<16x256xf32>
    %36 = vector.extract_strided_slice %19 {offsets = [96, 0], sizes = [16, 1], strides = [1, 1]} : vector<112x1xf32> to vector<16x1xf32>
    %37 = vector.broadcast %36 : vector<16x1xf32> to vector<16x256xf32>
    %38 = arith.addf %35, %37 : vector<16x256xf32>
    %39 = vector.extract_strided_slice %38 {offsets = [0, 0], sizes = [8, 256], strides = [1, 1]} : vector<16x256xf32> to vector<8x256xf32>
    %40 = vector.extract_strided_slice %38 {offsets = [8, 0], sizes = [8, 256], strides = [1, 1]} : vector<16x256xf32> to vector<8x256xf32>
    %41 = arith.mulf %39, %39 : vector<8x256xf32>
    %cst_25 = arith.constant dense<0.000000e+00> : vector<256xf32>
    %42 = vector.multi_reduction <add>, %41, %cst_25 [0] : vector<8x256xf32> to vector<256xf32>
    %43 = vector.shape_cast %42 : vector<256xf32> to vector<1x256xf32>
    %44 = arith.mulf %40, %40 : vector<8x256xf32>
    %cst_26 = arith.constant dense<0.000000e+00> : vector<256xf32>
    %45 = vector.multi_reduction <add>, %44, %cst_26 [0] : vector<8x256xf32> to vector<256xf32>
    %46 = vector.shape_cast %45 : vector<256xf32> to vector<1x256xf32>
    %cst_27 = arith.constant 1.000000e-24 : f32
    %47 = vector.broadcast %cst_27 : f32 to vector<1x256xf32>
    %48 = arith.maximumf %43, %47 : vector<1x256xf32>
    %49 = math.rsqrt %48 : vector<1x256xf32>
    %cst_28 = arith.constant 1.000000e-24 : f32
    %50 = vector.broadcast %cst_28 : f32 to vector<1x256xf32>
    %51 = arith.maximumf %46, %50 : vector<1x256xf32>
    %52 = math.rsqrt %51 : vector<1x256xf32>
    %53 = arith.mulf %39, %40 : vector<8x256xf32>
    %cst_29 = arith.constant dense<0.000000e+00> : vector<256xf32>
    %54 = vector.multi_reduction <add>, %53, %cst_29 [0] : vector<8x256xf32> to vector<256xf32>
    %55 = vector.shape_cast %54 : vector<256xf32> to vector<1x256xf32>
    %56 = arith.mulf %55, %49 : vector<1x256xf32>
    %57 = arith.mulf %56, %52 : vector<1x256xf32>
    %cst_30 = arith.constant 5.000000e-01 : f32
    %58 = vector.broadcast %cst_30 : f32 to vector<1x256xf32>
    %59 = arith.mulf %58, %57 : vector<1x256xf32>
    %60 = math.tanh %59 : vector<1x256xf32>
    %cst_31 = arith.constant 1.000000e+00 : f32
    %61 = vector.broadcast %cst_31 : f32 to vector<1x256xf32>
    %62 = arith.addf %60, %61 : vector<1x256xf32>
    %cst_32 = arith.constant 5.000000e-01 : f32
    %63 = vector.broadcast %cst_32 : f32 to vector<1x256xf32>
    %64 = arith.mulf %63, %62 : vector<1x256xf32>
    %c0_33 = arith.constant 0 : index
    %c0_34 = arith.constant 0 : index
    %65 = vector.load %arg9[%c0_33, %c0_34] : memref<1x256xf32, #tpu.memory_space<vmem>>, vector<1x256xf32>
    tpu.vector_store %arg9[%c0_33, %c0_34], %64 {strides = array<i32>} : memref<1x256xf32, #tpu.memory_space<vmem>>, vector<1x256xf32>,
    return
  }
  func.func @transform_0(%arg0: i32) -> (i32, i32) {
    %c0_i32 = arith.constant 0 : i32
    %c0_i32_0 = arith.constant 0 : i32
    return %c0_i32, %arg0 : i32, i32
  }
  func.func @transform_1(%arg0: i32) -> (i32, i32) {
    %c0_i32 = arith.constant 0 : i32
    %c0_i32_0 = arith.constant 0 : i32
    return %c0_i32, %arg0 : i32, i32
  }
  func.func @transform_2(%arg0: i32) -> (i32, i32) {
    %c0_i32 = arith.constant 0 : i32
    %c0_i32_0 = arith.constant 0 : i32
    %c0_i32_1 = arith.constant 0 : i32
    return %c0_i32, %c0_i32_0 : i32, i32
  }
  func.func @transform_3(%arg0: i32) -> (i32, i32) {
    %c0_i32 = arith.constant 0 : i32
    %c0_i32_0 = arith.constant 0 : i32
    %c0_i32_1 = arith.constant 0 : i32
    return %c0_i32, %c0_i32_0 : i32, i32
  }
  func.func @transform_4(%arg0: i32) -> (i32, i32) {
    %c0_i32 = arith.constant 0 : i32
    %c0_i32_0 = arith.constant 0 : i32
    %c0_i32_1 = arith.constant 0 : i32
    return %c0_i32, %c0_i32_0 : i32, i32
  }
  func.func @transform_5(%arg0: i32) -> (i32, i32) {
    %c0_i32 = arith.constant 0 : i32
    %c0_i32_0 = arith.constant 0 : i32
    %c0_i32_1 = arith.constant 0 : i32
    return %c0_i32, %c0_i32_0 : i32, i32
  }
  func.func @transform_6(%arg0: i32) -> (i32, i32) {
    %c0_i32 = arith.constant 0 : i32
    %c0_i32_0 = arith.constant 0 : i32
    %c0_i32_1 = arith.constant 0 : i32
    return %c0_i32, %c0_i32_0 : i32, i32
  }
  func.func @transform_7(%arg0: i32) -> (i32, i32) {
    %c0_i32 = arith.constant 0 : i32
    %c0_i32_0 = arith.constant 0 : i32
    %c0_i32_1 = arith.constant 0 : i32
    return %c0_i32, %c0_i32_0 : i32, i32
  }
  func.func @transform_8(%arg0: i32) -> (i32, i32) {
    %c0_i32 = arith.constant 0 : i32
    %c0_i32_0 = arith.constant 0 : i32
    return %c0_i32, %arg0 : i32, i32
  }
}

</mosaic_0001>

<llo_original>
// kernel: dmf_forward.1
$region0: #{dmf_forward.1}
  #allocation0 [shape = 'u32[]', space=smem, size = 0x4, offset = 0x4, fixed_abs, tag = 'smem constant byte address 0x4 - core index']
  #allocation1 [shape = 'u32[72,128]{1,0:T(1,128)}', space=vmem, size = 0x9000, scoped, tag = 'internal scratch']
  %s0 = inlined_call_operand.vmem [shape: s32[1,1024], index: 0, kind: input, shape index: {}]
  %s1 = inlined_call_operand.vmem [shape: s32[1,1024], index: 1, kind: input, shape index: {}]
  %s2 = inlined_call_operand.hbm [shape: f32[64,128], index: 2, kind: input, shape index: {}]
  %s3 = inlined_call_operand.vmem [shape: f32[64,256], index: 3, kind: input, shape index: {}]
  %s4 = inlined_call_operand.hbm [shape: f32[64,128], index: 4, kind: input, shape index: {}]
  %s5 = inlined_call_operand.hbm [shape: f32[32,64], index: 5, kind: input, shape index: {}]
  %s6 = inlined_call_operand.vmem [shape: f32[16,32], index: 6, kind: input, shape index: {}]
  %s7 = inlined_call_operand.vmem [shape: f32[112,1], index: 7, kind: input, shape index: {}]
  %s8 = inlined_call_operand.hbm [shape: f32[1,1024], index: 8, kind: output, shape index: {}]
  %s9 = sld [smem:[#allocation0]]
  $region77: #{dmf_forward.1} parent=0
    _
  %s11 = ssub.s32 1, %s9
  %s12 = scalar_select 0, %s11, %s9
  $region1: #{dmf_forward.1} parent=0
    #allocation2 [shape = 'u8[32768]{0}', space=vmem, size = 0x8000, scoped, tag = 'input window, operand 2, single buffered']
    #allocation3 [shape = 's32[2]{0}', space=sflag, size = 0x8, scoped, tag = 'scoped memory for dmf_forward.1']
    #allocation4 [shape = 's32[2]{0}', space=sflag, size = 0x8, scoped, tag = 'scoped memory for dmf_forward.1']
    #allocation5 [shape = 'u8[32768]{0}', space=vmem, size = 0x8000, scoped, tag = 'input window, operand 4, single buffered']
    #allocation6 [shape = 's32[1]{0}', space=sflag, size = 0x4, scoped, tag = 'scoped memory for dmf_forward.1']
    #allocation7 [shape = 'u8[16384]{0}', space=vmem, size = 0x4000, scoped, tag = 'input window, operand 5, single buffered']
    #allocation8 [shape = 'u8[2048]{0}', space=vmem, size = 0x800, scoped, tag = 'output window, operand 0']
    %13 = vsyncpa [#allocation3], 0
    %14 = vsyncpa [#allocation6], 0
    %15 = vsyncpa [#allocation4], 0
    %s16 = scalar_lea.sflag [#allocation4], 1
    %17 = vsyncpa %s16, 0
    loop: start=0, step=1, limit=6
    $region2: #{dmf_forward.1} parent=1 // loop_pre_header
      _
    $region3: #{dmf_forward.1} parent=1 // loop_header
      %s19 = sphi 0, %s23
      %p20 = scmp.ge.s32.totalorder %s19, 6
      %s29 = sphi 0, %s31
      %s32 = sphi 0, %s29
      %s33 = sphi 0, %s32
      %s49 = sphi 0, %s33
      %s55 = sphi 0, %s57
      %s58 = sphi 0, %s55
      %s59 = sphi 0, %s58
      %s75 = sphi 0, %s59
      %s79 = sphi 0, %s79
      %s81 = sphi 0, %s79
      %s82 = sphi 0, %s81
      %s96 = sphi 0, %s82
      %s100 = sphi 0, %s100
      %s102 = sphi 0, %s100
      %s103 = sphi 0, %s102
      %s117 = sphi 0, %s103
      %s121 = sphi 0, %s121
      %s123 = sphi 0, %s121
      %s124 = sphi 0, %s123
      %s138 = sphi 0, %s124
      %s142 = sphi 0, %s142
      %s144 = sphi 0, %s142
      %s145 = sphi 0, %s144
      %s159 = sphi 0, %s145
      %s163 = sphi 0, %s163
      %s165 = sphi 0, %s163
      %s166 = sphi 0, %s165
      %s180 = sphi 0, %s166
      %s184 = sphi 0, %s184
      %s186 = sphi 0, %s184
      %s187 = sphi 0, %s186
      %s201 = sphi 0, %s187
      %s207 = sphi 0, %s209
      %s210 = sphi 0, %s207
      %s211 = sphi 0, %s210
      %s227 = sphi 0, %s211
    $region4: #{dmf_forward.1} parent=1 // loop_header_branch
      %22 = sbr.rel (%p20) target = $region8
    $region5: #{dmf_forward.1} parent=1 // loop_body
      %s24 = ssub.s32 %s19, 1
      %s25 = ssub.s32 %s19, 2
      %s26 = sadd.s32 %s19, 1
      %s27 = ssub.s32 %s19, %s26
      %p28 = scmp.eq.s32.totalorder %s27, 0
      %s30 = sadd.s32 %s29, 1
      %s31 = scalar_select %p28, %s29, %s30
      %p34 = pneg %p28
      %p35 = scmp.eq.s32.totalorder %s19, 3
      %p36 = por %p34, %p35
      %p37 = scmp.ne.s32.totalorder %s29, %s32
      %p38 = scmp.eq.s32.totalorder %s19, 0
      %p39 = por %p37, %p38
      %p40 = scmp.ne.s32.totalorder %s29, %s32
      %p41 = scmp.eq.s32.totalorder %s24, 3
      %p42 = por %p40, %p41
      %p43 = scmp.ne.s32.totalorder %s32, %s33
      %p44 = scmp.eq.s32.totalorder %s24, 0
      %p45 = por %p43, %p44
      %p46 = scmp.ne.s32.totalorder %s32, %s33
      %p47 = scmp.eq.s32.totalorder %s25, 3
      %p48 = por %p46, %p47
      %p50 = scmp.ne.s32.totalorder %s33, %s49
      %p51 = scmp.eq.s32.totalorder %s25, 0
      %p52 = por %p50, %p51
      %s53 = ssub.s32 %s19, %s26
      %p54 = scmp.eq.s32.totalorder %s53, 0
      %s56 = sadd.s32 %s55, 1
      %s57 = scalar_select %p54, %s55, %s56
      %p60 = pneg %p54
      %p61 = scmp.eq.s32.totalorder %s19, 3
      %p62 = por %p60, %p61
      %p63 = scmp.ne.s32.totalorder %s55, %s58
      %p64 = scmp.eq.s32.totalorder %s19, 0
      %p65 = por %p63, %p64
      %p66 = scmp.ne.s32.totalorder %s55, %s58
      %p67 = scmp.eq.s32.totalorder %s24, 3
      %p68 = por %p66, %p67
      %p69 = scmp.ne.s32.totalorder %s58, %s59
      %p70 = scmp.eq.s32.totalorder %s24, 0
      %p71 = por %p69, %p70
      %p72 = scmp.ne.s32.totalorder %s58, %s59
      %p73 = scmp.eq.s32.totalorder %s25, 3
      %p74 = por %p72, %p73
      %p76 = scmp.ne.s32.totalorder %s59, %s75
      %p77 = scmp.eq.s32.totalorder %s25, 0
      %p78 = por %p76, %p77
      %s80 = sadd.s32 %s79, 1
      %p83 = scmp.eq.s32.totalorder %s19, 3
      %p84 = scmp.ne.s32.totalorder %s79, %s81
      %p85 = scmp.eq.s32.totalorder %s19, 0
      %p86 = por %p84, %p85
      %p87 = scmp.ne.s32.totalorder %s79, %s81
      %p88 = scmp.eq.s32.totalorder %s24, 3
      %p89 = por %p87, %p88
      %p90 = scmp.ne.s32.totalorder %s81, %s82
      %p91 = scmp.eq.s32.totalorder %s24, 0
      %p92 = por %p90, %p91
      %p93 = scmp.ne.s32.totalorder %s81, %s82
      %p94 = scmp.eq.s32.totalorder %s25, 3
      %p95 = por %p93, %p94
      %p97 = scmp.ne.s32.totalorder %s82, %s96
      %p98 = scmp.eq.s32.totalorder %s25, 0
      %p99 = por %p97, %p98
      %s101 = sadd.s32 %s100, 1
      %p104 = scmp.eq.s32.totalorder %s19, 3
      %p105 = scmp.ne.s32.totalorder %s100, %s102
      %p106 = scmp.eq.s32.totalorder %s19, 0
      %p107 = por %p105, %p106
      %p108 = scmp.ne.s32.totalorder %s100, %s102
      %p109 = scmp.eq.s32.totalorder %s24, 3
      %p110 = por %p108, %p109
      %p111 = scmp.ne.s32.totalorder %s102, %s103
      %p112 = scmp.eq.s32.totalorder %s24, 0
      %p113 = por %p111, %p112
      %p114 = scmp.ne.s32.totalorder %s102, %s103
      %p115 = scmp.eq.s32.totalorder %s25, 3
      %p116 = por %p114, %p115
      %p118 = scmp.ne.s32.totalorder %s103, %s117
      %p119 = scmp.eq.s32.totalorder %s25, 0
      %p120 = por %p118, %p119
      %s122 = sadd.s32 %s121, 1
      %p125 = scmp.eq.s32.totalorder %s19, 3
      %p126 = scmp.ne.s32.totalorder %s121, %s123
      %p127 = scmp.eq.s32.totalorder %s19, 0
      %p128 = por %p126, %p127
      %p129 = scmp.ne.s32.totalorder %s121, %s123
      %p130 = scmp.eq.s32.totalorder %s24, 3
      %p131 = por %p129, %p130
      %p132 = scmp.ne.s32.totalorder %s123, %s124
      %p133 = scmp.eq.s32.totalorder %s24, 0
      %p134 = por %p132, %p133
      %p135 = scmp.ne.s32.totalorder %s123, %s124
      %p136 = scmp.eq.s32.totalorder %s25, 3
      %p137 = por %p135, %p136
      %p139 = scmp.ne.s32.totalorder %s124, %s138
      %p140 = scmp.eq.s32.totalorder %s25, 0
      %p141 = por %p139, %p140
      %s143 = sadd.s32 %s142, 1
      %p146 = scmp.eq.s32.totalorder %s19, 3
      %p147 = scmp.ne.s32.totalorder %s142, %s144
      %p148 = scmp.eq.s32.totalorder %s19, 0
      %p149 = por %p147, %p148
      %p150 = scmp.ne.s32.totalorder %s142, %s144
      %p151 = scmp.eq.s32.totalorder %s24, 3
      %p152 = por %p150, %p151
      %p153 = scmp.ne.s32.totalorder %s144, %s145
      %p154 = scmp.eq.s32.totalorder %s24, 0
      %p155 = por %p153, %p154
      %p156 = scmp.ne.s32.totalorder %s144, %s145
      %p157 = scmp.eq.s32.totalorder %s25, 3
      %p158 = por %p156, %p157
      %p160 = scmp.ne.s32.totalorder %s145, %s159
      %p161 = scmp.eq.s32.totalorder %s25, 0
      %p162 = por %p160, %p161
      %s164 = sadd.s32 %s163, 1
      %p167 = scmp.eq.s32.totalorder %s19, 3
      %p168 = scmp.ne.s32.totalorder %s163, %s165
      %p169 = scmp.eq.s32.totalorder %s19, 0
      %p170 = por %p168, %p169
      %p171 = scmp.ne.s32.totalorder %s163, %s165
      %p172 = scmp.eq.s32.totalorder %s24, 3
      %p173 = por %p171, %p172
      %p174 = scmp.ne.s32.totalorder %s165, %s166
      %p175 = scmp.eq.s32.totalorder %s24, 0
      %p176 = por %p174, %p175
      %p177 = scmp.ne.s32.totalorder %s165, %s166
      %p178 = scmp.eq.s32.totalorder %s25, 3
      %p179 = por %p177, %p178
      %p181 = scmp.ne.s32.totalorder %s166, %s180
      %p182 = scmp.eq.s32.totalorder %s25, 0
      %p183 = por %p181, %p182
      %s185 = sadd.s32 %s184, 1
      %p188 = scmp.eq.s32.totalorder %s19, 3
      %p189 = scmp.ne.s32.totalorder %s184, %s186
      %p190 = scmp.eq.s32.totalorder %s19, 0
      %p191 = por %p189, %p190
      %p192 = scmp.ne.s32.totalorder %s184, %s186
      %p193 = scmp.eq.s32.totalorder %s24, 3
      %p194 = por %p192, %p193
      %p195 = scmp.ne.s32.totalorder %s186, %s187
      %p196 = scmp.eq.s32.totalorder %s24, 0
      %p197 = por %p195, %p196
      %p198 = scmp.ne.s32.totalorder %s186, %s187
      %p199 = scmp.eq.s32.totalorder %s25, 3
      %p200 = por %p198, %p199
      %p202 = scmp.ne.s32.totalorder %s187, %s201
      %p203 = scmp.eq.s32.totalorder %s25, 0
      %p204 = por %p202, %p203
      %s205 = ssub.s32 %s19, %s26
      %p206 = scmp.eq.s32.totalorder %s205, 0
      %s208 = sadd.s32 %s207, 1
      %s209 = scalar_select %p206, %s207, %s208
      %p212 = pneg %p206
      %p213 = scmp.eq.s32.totalorder %s19, 3
      %p214 = por %p212, %p213
      %p215 = scmp.ne.s32.totalorder %s207, %s210
      %p216 = scmp.eq.s32.totalorder %s19, 0
      %p217 = por %p215, %p216
      %p218 = scmp.ne.s32.totalorder %s207, %s210
      %p219 = scmp.eq.s32.totalorder %s24, 3
      %p220 = por %p218, %p219
      %p221 = scmp.ne.s32.totalorder %s210, %s211
      %p222 = scmp.eq.s32.totalorder %s24, 0
      %p223 = por %p221, %p222
      %p224 = scmp.ne.s32.totalorder %s210, %s211
      %p225 = scmp.eq.s32.totalorder %s25, 3
      %p226 = por %p224, %p225
      %p228 = scmp.ne.s32.totalorder %s211, %s227
      %p229 = scmp.eq.s32.totalorder %s25, 0
      %p230 = por %p228, %p229
      %p231 = scmp.le.s32.totalorder 1, %s19
      %p232 = scmp.lt.s32.totalorder %s19, 5
      %p233 = pnand %p231, %p232
      %p234 = pneg %p233
      // Predicated region
      $region9: #{dmf_forward.1} parent=5 // pred_check
        _
      $region10: #{dmf_forward.1} parent=5 // pred_check_branch
        %236 = sbr.rel (%p233) target = $region12
      $region11: #{dmf_forward.1} parent=5 // pred_region
        %s237 = ssub.s32 %s19, 1
        // Predicated region
        $region13: #{dmf_forward.1} parent=11 // pred_check
          %p238 = pneg %p92
        $region14: #{dmf_forward.1} parent=11 // pred_check_branch
          %240 = sbr.rel (%p238) target = $region16
        $region15: #{dmf_forward.1} parent=11 // pred_region
          %242 = vsyncadd [#allocation3], 0
          %s243 = sshll.u32 %s2, 4
          %s244 = int_to_ptr.hbm [resolvable:$true] %s243
          %s245 = sshll.u32 [#allocation2], 4
          %s246 = int_to_ptr.vmem [resolvable:$true] %s245
          %251 = dma.hbm_to_vmem [thread:$0]  %s244, 1024, %s246, [#allocation3], 128, 128, 8
        $region16: #{dmf_forward.1} parent=11 // pred_fallthru
          _
        // Predicated region
        $region17: #{dmf_forward.1} parent=11 // pred_check
          %p252 = pneg %p113
        $region18: #{dmf_forward.1} parent=11 // pred_check_branch
          %254 = sbr.rel (%p252) target = $region20
        $region19: #{dmf_forward.1} parent=11 // pred_region
          _
        $region20: #{dmf_forward.1} parent=11 // pred_fallthru
          _
        // Predicated region
        $region21: #{dmf_forward.1} parent=11 // pred_check
          %p255 = pneg %p134
        $region22: #{dmf_forward.1} parent=11 // pred_check_branch
          %257 = sbr.rel (%p255) target = $region24
        $region23: #{dmf_forward.1} parent=11 // pred_region
          %259 = vsyncadd [#allocation6], 0
          %s260 = sshll.u32 %s4, 4
          %s261 = int_to_ptr.hbm [resolvable:$true] %s260
          %s262 = sshll.u32 [#allocation5], 4
          %s263 = int_to_ptr.vmem [resolvable:$true] %s262
          %268 = dma.hbm_to_vmem [thread:$0]  %s261, 1024, %s263, [#allocation6], 128, 128, 8
        $region24: #{dmf_forward.1} parent=11 // pred_fallthru
          _
        // Predicated region
        $region25: #{dmf_forward.1} parent=11 // pred_check
          %p269 = pneg %p155
        $region26: #{dmf_forward.1} parent=11 // pred_check_branch
          %271 = sbr.rel (%p269) target = $region28
        $region27: #{dmf_forward.1} parent=11 // pred_region
          %273 = vsyncadd [#allocation6], 0
          %s274 = sshll.u32 %s5, 4
          %s275 = int_to_ptr.hbm [resolvable:$true] %s274
          %s276 = sshll.u32 [#allocation7], 4
          %s277 = int_to_ptr.vmem [resolvable:$true] %s276
          %282 = dma.hbm_to_vmem [thread:$0]  %s275, 512, %s277, [#allocation6], 128, 128, 8
        $region28: #{dmf_forward.1} parent=11 // pred_fallthru
          _
        // Predicated region
        $region29: #{dmf_forward.1} parent=11 // pred_check
          %p283 = pneg %p176
        $region30: #{dmf_forward.1} parent=11 // pred_check_branch
          %285 = sbr.rel (%p283) target = $region32
        $region31: #{dmf_forward.1} parent=11 // pred_region
          _
        $region32: #{dmf_forward.1} parent=11 // pred_fallthru
          _
        // Predicated region
        $region33: #{dmf_forward.1} parent=11 // pred_check
          %p286 = pneg %p197
        $region34: #{dmf_forward.1} parent=11 // pred_check_branch
          %288 = sbr.rel (%p286) target = $region36
        $region35: #{dmf_forward.1} parent=11 // pred_region
          _
        $region36: #{dmf_forward.1} parent=11 // pred_fallthru
          _
      $region12: #{dmf_forward.1} parent=5 // pred_fallthru
        _
      %p289 = scmp.lt.s32.totalorder %s19, 4
      // Predicated region
      $region37: #{dmf_forward.1} parent=5 // pred_check
        %p290 = pneg %p289
      $region38: #{dmf_forward.1} parent=5 // pred_check_branch
        %292 = sbr.rel (%p290) target = $region40
      $region39: #{dmf_forward.1} parent=5 // pred_region
        // Predicated region
        $region41: #{dmf_forward.1} parent=39 // pred_check
          %p293 = pneg %p39
        $region42: #{dmf_forward.1} parent=39 // pred_check_branch
          %295 = sbr.rel (%p293) target = $region44
        $region43: #{dmf_forward.1} parent=39 // pred_region
          %s296 = smul.u32 2, %s19
          %p297 = scmp.lt.s32.totalorder %s296, 7
          %s298 = scalar_select %p297, %s296, 7
          %s299 = scalar_lea.vmem %s0, %s298
          %s300 = smul.u32 2, %s19
        $region44: #{dmf_forward.1} parent=39 // pred_fallthru
          _
        // Predicated region
        $region45: #{dmf_forward.1} parent=39 // pred_check
          %p301 = pneg %p65
        $region46: #{dmf_forward.1} parent=39 // pred_check_branch
          %303 = sbr.rel (%p301) target = $region48
        $region47: #{dmf_forward.1} parent=39 // pred_region
          %s304 = smul.u32 2, %s19
          %p305 = scmp.lt.s32.totalorder %s304, 7
          %s306 = scalar_select %p305, %s304, 7
          %s307 = scalar_lea.vmem %s1, %s306
          %s308 = smul.u32 2, %s19
        $region48: #{dmf_forward.1} parent=39 // pred_fallthru
          _
      $region40: #{dmf_forward.1} parent=5 // pred_fallthru
        _
      %p309 = scmp.le.s32.totalorder 1, %s19
      %p310 = scmp.lt.s32.totalorder %s19, 5
      %p311 = pnand %p309, %p310
      %p312 = pneg %p311
      // Predicated region
      $region49: #{dmf_forward.1} parent=5 // pred_check
        _
      $region50: #{dmf_forward.1} parent=5 // pred_check_branch
        %314 = sbr.rel (%p311) target = $region52
      $region51: #{dmf_forward.1} parent=5 // pred_region
        %s315 = ssub.s32 %s19, 1
        // Predicated region
        $region53: #{dmf_forward.1} parent=51 // pred_check
          %p316 = pneg %p92
        $region54: #{dmf_forward.1} parent=51 // pred_check_branch
          %318 = sbr.rel (%p316) target = $region56
        $region55: #{dmf_forward.1} parent=51 // pred_region
          %320 = dma.done [#allocation3], 1024
        $region56: #{dmf_forward.1} parent=51 // pred_fallthru
          _
        // Predicated region
        $region57: #{dmf_forward.1} parent=51 // pred_check
          %p321 = pneg %p134
        $region58: #{dmf_forward.1} parent=51 // pred_check_branch
          %323 = sbr.rel (%p321) target = $region60
        $region59: #{dmf_forward.1} parent=51 // pred_region
          %325 = dma.done [#allocation6], 1024
        $region60: #{dmf_forward.1} parent=51 // pred_fallthru
          _
        // Predicated region
        $region61: #{dmf_forward.1} parent=51 // pred_check
          %p326 = pneg %p155
        $region62: #{dmf_forward.1} parent=51 // pred_check_branch
          %328 = sbr.rel (%p326) target = $region64
        $region63: #{dmf_forward.1} parent=51 // pred_region
          %330 = dma.done [#allocation6], 512
        $region64: #{dmf_forward.1} parent=51 // pred_fallthru
          _
        %s331 = smul.u32 2, %s24
        %p332 = scmp.lt.s32.totalorder %s331, 7
        %s333 = scalar_select %p332, %s331, 7
        %s334 = scalar_lea.vmem %s0, %s333
        %p335 = pneg %p45
        %p336 = pneg %p42
        %s337 = smul.u32 2, %s24
        %p338 = scmp.lt.s32.totalorder %s337, 7
        %s339 = scalar_select %p338, %s337, 7
        %s340 = scalar_lea.vmem %s1, %s339
        %p341 = pneg %p71
        %p342 = pneg %p68
        %p343 = pneg %p92
        %p344 = pneg %p89
        %p345 = pneg %p113
        %p346 = pneg %p110
        %p347 = pneg %p134
        %p348 = pneg %p131
        %p349 = pneg %p155
        %p350 = pneg %p152
        %p351 = pneg %p176
        %p352 = pneg %p173
        %p353 = pneg %p197
        %p354 = pneg %p194
        %p355 = pneg %p223
        %p356 = pneg %p220
        %s357 = sand.u32 %s210, 1
        %s358 = scalar_lea.sflag [#allocation4], %s357
        %s359 = sand.u32 %s210, 1
        %s360 = smul.addr %s359, 2
        %s361 = scalar_lea.vmem [#allocation8], %s360
        %s362 = smul.u32 2, %s24
        %p363 = scmp.lt.s32.totalorder %s362, 7
        %s364 = scalar_select %p363, %s362, 7
        %s365 = scalar_lea.vmem %s0, %s364
        %s366 = smul.u32 2, %s24
        %s367 = smul.u32 2, %s24
        %p368 = scmp.lt.s32.totalorder %s367, 7
        %s369 = scalar_select %p368, %s367, 7
        %s370 = scalar_lea.vmem %s1, %s369
        %s371 = smul.u32 2, %s24
        %s372 = smul.u32 2, %s24
        %v373 = vld [vmem:[%s365] sm:$0x3]
        %v374 = vld [vmem:[%s370] sm:$0x3]
        %v375 = vlaneseq
        %v376 = vshrl.u32 %v375, 7
        %v377 = vadd.s32 %v376, 8
        %v378 = vadd.s32 %v376, 16
        %v379 = vadd.s32 %v376, 24
        %v380 = vadd.s32 %v376, 32
        %v381 = vadd.s32 %v376, 40
        %v382 = vadd.s32 %v376, 48
        %v383 = vadd.s32 %v376, 56
        %v384 = vadd.s32 %v376, 64
        %v385 = vadd.s32 %v376, 72
        %v386 = vadd.s32 %v376, 80
        %v387 = vadd.s32 %v376, 88
        %v388 = vadd.s32 %v376, 96
        %v389 = vadd.s32 %v376, 104
        %v390 = vadd.s32 %v376, 112
        %v391 = vadd.s32 %v376, 120
        %v392 = vperm.slane %v373, 0
        %v393 = vperm.slane %v373, 1
        %vm394 = vcmp.eq.s32.totalorder %v376, %v392
        %vm395 = vcmp.eq.s32.totalorder %v376, %v393
        %vm396 = vcmp.eq.s32.totalorder %v377, %v392
        %vm397 = vcmp.eq.s32.totalorder %v377, %v393
        %vm398 = vcmp.eq.s32.totalorder %v378, %v392
        %vm399 = vcmp.eq.s32.totalorder %v378, %v393
        %vm400 = vcmp.eq.s32.totalorder %v379, %v392
        %vm401 = vcmp.eq.s32.totalorder %v379, %v393
        %vm402 = vcmp.eq.s32.totalorder %v380, %v392
        %vm403 = vcmp.eq.s32.totalorder %v380, %v393
        %vm404 = vcmp.eq.s32.totalorder %v381, %v392
        %vm405 = vcmp.eq.s32.totalorder %v381, %v393
        %vm406 = vcmp.eq.s32.totalorder %v382, %v392
        %vm407 = vcmp.eq.s32.totalorder %v382, %v393
        %vm408 = vcmp.eq.s32.totalorder %v383, %v392
        %vm409 = vcmp.eq.s32.totalorder %v383, %v393
        %vm410 = vcmp.eq.s32.totalorder %v384, %v392
        %vm411 = vcmp.eq.s32.totalorder %v384, %v393
        %vm412 = vcmp.eq.s32.totalorder %v385, %v392
        %vm413 = vcmp.eq.s32.totalorder %v385, %v393
        %vm414 = vcmp.eq.s32.totalorder %v386, %v392
        %vm415 = vcmp.eq.s32.totalorder %v386, %v393
        %vm416 = vcmp.eq.s32.totalorder %v387, %v392
        %vm417 = vcmp.eq.s32.totalorder %v387, %v393
        %vm418 = vcmp.eq.s32.totalorder %v388, %v392
        %vm419 = vcmp.eq.s32.totalorder %v388, %v393
        %vm420 = vcmp.eq.s32.totalorder %v389, %v392
        %vm421 = vcmp.eq.s32.totalorder %v389, %v393
        %vm422 = vcmp.eq.s32.totalorder %v390, %v392
        %vm423 = vcmp.eq.s32.totalorder %v390, %v393
        %vm424 = vcmp.eq.s32.totalorder %v391, %v392
        %vm425 = vcmp.eq.s32.totalorder %v391, %v393
        %v426 = vsel %vm394, 1.0, 0.0
        %v427 = vsel %vm395, 1.0, 0.0
        %v428 = vsel %vm396, 1.0, 0.0
        %v429 = vsel %vm397, 1.0, 0.0
        %v430 = vsel %vm398, 1.0, 0.0
        %v431 = vsel %vm399, 1.0, 0.0
        %v432 = vsel %vm400, 1.0, 0.0
        %v433 = vsel %vm401, 1.0, 0.0
        %v434 = vsel %vm402, 1.0, 0.0
        %v435 = vsel %vm403, 1.0, 0.0
        %v436 = vsel %vm404, 1.0, 0.0
        %v437 = vsel %vm405, 1.0, 0.0
        %v438 = vsel %vm406, 1.0, 0.0
        %v439 = vsel %vm407, 1.0, 0.0
        %v440 = vsel %vm408, 1.0, 0.0
        %v441 = vsel %vm409, 1.0, 0.0
        %v442 = vsel %vm410, 1.0, 0.0
        %v443 = vsel %vm411, 1.0, 0.0
        %v444 = vsel %vm412, 1.0, 0.0
        %v445 = vsel %vm413, 1.0, 0.0
        %v446 = vsel %vm414, 1.0, 0.0
        %v447 = vsel %vm415, 1.0, 0.0
        %v448 = vsel %vm416, 1.0, 0.0
        %v449 = vsel %vm417, 1.0, 0.0
        %v450 = vsel %vm418, 1.0, 0.0
        %v451 = vsel %vm419, 1.0, 0.0
        %v452 = vsel %vm420, 1.0, 0.0
        %v453 = vsel %vm421, 1.0, 0.0
        %v454 = vsel %vm422, 1.0, 0.0
        %v455 = vsel %vm423, 1.0, 0.0
        %v456 = vsel %vm424, 1.0, 0.0
        %v457 = vsel %vm425, 1.0, 0.0
        %v458 = vadd.s32 %v376, 128
        %v459 = vadd.s32 %v376, 136
        %v460 = vadd.s32 %v376, 144
        %v461 = vadd.s32 %v376, 152
        %v462 = vadd.s32 %v376, 160
        %v463 = vadd.s32 %v376, 168
        %v464 = vadd.s32 %v376, 176
        %v465 = vadd.s32 %v376, 184
        %v466 = vadd.s32 %v376, 192
        %v467 = vadd.s32 %v376, 200
        %v468 = vadd.s32 %v376, 208
        %v469 = vadd.s32 %v376, 216
        %v470 = vadd.s32 %v376, 224
        %v471 = vadd.s32 %v376, 232
        %v472 = vadd.s32 %v376, 240
        %v473 = vadd.s32 %v376, 248
        %v474 = vperm.slane %v374, 0
        %v475 = vperm.slane %v374, 1
        %vm476 = vcmp.eq.s32.totalorder %v376, %v474
        %vm477 = vcmp.eq.s32.totalorder %v376, %v475
        %vm478 = vcmp.eq.s32.totalorder %v377, %v474
        %vm479 = vcmp.eq.s32.totalorder %v377, %v475
        %vm480 = vcmp.eq.s32.totalorder %v378, %v474
        %vm481 = vcmp.eq.s32.totalorder %v378, %v475
        %vm482 = vcmp.eq.s32.totalorder %v379, %v474
        %vm483 = vcmp.eq.s32.totalorder %v379, %v475
        %vm484 = vcmp.eq.s32.totalorder %v380, %v474
        %vm485 = vcmp.eq.s32.totalorder %v380, %v475
        %vm486 = vcmp.eq.s32.totalorder %v381, %v474
        %vm487 = vcmp.eq.s32.totalorder %v381, %v475
        %vm488 = vcmp.eq.s32.totalorder %v382, %v474
        %vm489 = vcmp.eq.s32.totalorder %v382, %v475
        %vm490 = vcmp.eq.s32.totalorder %v383, %v474
        %vm491 = vcmp.eq.s32.totalorder %v383, %v475
        %vm492 = vcmp.eq.s32.totalorder %v384, %v474
        %vm493 = vcmp.eq.s32.totalorder %v384, %v475
        %vm494 = vcmp.eq.s32.totalorder %v385, %v474
        %vm495 = vcmp.eq.s32.totalorder %v385, %v475
        %vm496 = vcmp.eq.s32.totalorder %v386, %v474
        %vm497 = vcmp.eq.s32.totalorder %v386, %v475
        %vm498 = vcmp.eq.s32.totalorder %v387, %v474
        %vm499 = vcmp.eq.s32.totalorder %v387, %v475
        %vm500 = vcmp.eq.s32.totalorder %v388, %v474
        %vm501 = vcmp.eq.s32.totalorder %v388, %v475
        %vm502 = vcmp.eq.s32.totalorder %v389, %v474
        %vm503 = vcmp.eq.s32.totalorder %v389, %v475
        %vm504 = vcmp.eq.s32.totalorder %v390, %v474
        %vm505 = vcmp.eq.s32.totalorder %v390, %v475
        %vm506 = vcmp.eq.s32.totalorder %v391, %v474
        %vm507 = vcmp.eq.s32.totalorder %v391, %v475
        %vm508 = vcmp.eq.s32.totalorder %v458, %v474
        %vm509 = vcmp.eq.s32.totalorder %v458, %v475
        %vm510 = vcmp.eq.s32.totalorder %v459, %v474
        %vm511 = vcmp.eq.s32.totalorder %v459, %v475
        %vm512 = vcmp.eq.s32.totalorder %v460, %v474
        %vm513 = vcmp.eq.s32.totalorder %v460, %v475
        %vm514 = vcmp.eq.s32.totalorder %v461, %v474
        %vm515 = vcmp.eq.s32.totalorder %v461, %v475
        %vm516 = vcmp.eq.s32.totalorder %v462, %v474
        %vm517 = vcmp.eq.s32.totalorder %v462, %v475
        %vm518 = vcmp.eq.s32.totalorder %v463, %v474
        %vm519 = vcmp.eq.s32.totalorder %v463, %v475
        %vm520 = vcmp.eq.s32.totalorder %v464, %v474
        %vm521 = vcmp.eq.s32.totalorder %v464, %v475
        %vm522 = vcmp.eq.s32.totalorder %v465, %v474
        %vm523 = vcmp.eq.s32.totalorder %v465, %v475
        %vm524 = vcmp.eq.s32.totalorder %v466, %v474
        %vm525 = vcmp.eq.s32.totalorder %v466, %v475
        %vm526 = vcmp.eq.s32.totalorder %v467, %v474
        %vm527 = vcmp.eq.s32.totalorder %v467, %v475
        %vm528 = vcmp.eq.s32.totalorder %v468, %v474
        %vm529 = vcmp.eq.s32.totalorder %v468, %v475
        %vm530 = vcmp.eq.s32.totalorder %v469, %v474
        %vm531 = vcmp.eq.s32.totalorder %v469, %v475
        %vm532 = vcmp.eq.s32.totalorder %v470, %v474
        %vm533 = vcmp.eq.s32.totalorder %v470, %v475
        %vm534 = vcmp.eq.s32.totalorder %v471, %v474
        %vm535 = vcmp.eq.s32.totalorder %v471, %v475
        %vm536 = vcmp.eq.s32.totalorder %v472, %v474
        %vm537 = vcmp.eq.s32.totalorder %v472, %v475
        %vm538 = vcmp.eq.s32.totalorder %v473, %v474
        %vm539 = vcmp.eq.s32.totalorder %v473, %v475
        %v540 = vsel %vm476, 1.0, 0.0
        %v541 = vsel %vm477, 1.0, 0.0
        %v542 = vsel %vm478, 1.0, 0.0
        %v543 = vsel %vm479, 1.0, 0.0
        %v544 = vsel %vm480, 1.0, 0.0
        %v545 = vsel %vm481, 1.0, 0.0
        %v546 = vsel %vm482, 1.0, 0.0
        %v547 = vsel %vm483, 1.0, 0.0
        %v548 = vsel %vm484, 1.0, 0.0
        %v549 = vsel %vm485, 1.0, 0.0
        %v550 = vsel %vm486, 1.0, 0.0
        %v551 = vsel %vm487, 1.0, 0.0
        %v552 = vsel %vm488, 1.0, 0.0
        %v553 = vsel %vm489, 1.0, 0.0
        %v554 = vsel %vm490, 1.0, 0.0
        %v555 = vsel %vm491, 1.0, 0.0
        %v556 = vsel %vm492, 1.0, 0.0
        %v557 = vsel %vm493, 1.0, 0.0
        %v558 = vsel %vm494, 1.0, 0.0
        %v559 = vsel %vm495, 1.0, 0.0
        %v560 = vsel %vm496, 1.0, 0.0
        %v561 = vsel %vm497, 1.0, 0.0
        %v562 = vsel %vm498, 1.0, 0.0
        %v563 = vsel %vm499, 1.0, 0.0
        %v564 = vsel %vm500, 1.0, 0.0
        %v565 = vsel %vm501, 1.0, 0.0
        %v566 = vsel %vm502, 1.0, 0.0
        %v567 = vsel %vm503, 1.0, 0.0
        %v568 = vsel %vm504, 1.0, 0.0
        %v569 = vsel %vm505, 1.0, 0.0
        %v570 = vsel %vm506, 1.0, 0.0
        %v571 = vsel %vm507, 1.0, 0.0
        %v572 = vsel %vm508, 1.0, 0.0
        %v573 = vsel %vm509, 1.0, 0.0
        %v574 = vsel %vm510, 1.0, 0.0
        %v575 = vsel %vm511, 1.0, 0.0
        %v576 = vsel %vm512, 1.0, 0.0
        %v577 = vsel %vm513, 1.0, 0.0
        %v578 = vsel %vm514, 1.0, 0.0
        %v579 = vsel %vm515, 1.0, 0.0
        %v580 = vsel %vm516, 1.0, 0.0
        %v581 = vsel %vm517, 1.0, 0.0
        %v582 = vsel %vm518, 1.0, 0.0
        %v583 = vsel %vm519, 1.0, 0.0
        %v584 = vsel %vm520, 1.0, 0.0
        %v585 = vsel %vm521, 1.0, 0.0
        %v586 = vsel %vm522, 1.0, 0.0
        %v587 = vsel %vm523, 1.0, 0.0
        %v588 = vsel %vm524, 1.0, 0.0
        %v589 = vsel %vm525, 1.0, 0.0
        %v590 = vsel %vm526, 1.0, 0.0
        %v591 = vsel %vm527, 1.0, 0.0
        %v592 = vsel %vm528, 1.0, 0.0
        %v593 = vsel %vm529, 1.0, 0.0
        %v594 = vsel %vm530, 1.0, 0.0
        %v595 = vsel %vm531, 1.0, 0.0
        %v596 = vsel %vm532, 1.0, 0.0
        %v597 = vsel %vm533, 1.0, 0.0
        %v598 = vsel %vm534, 1.0, 0.0
        %v599 = vsel %vm535, 1.0, 0.0
        %v600 = vsel %vm536, 1.0, 0.0
        %v601 = vsel %vm537, 1.0, 0.0
        %v602 = vsel %vm538, 1.0, 0.0
        %v603 = vsel %vm539, 1.0, 0.0
        %v604 = vld [vmem:[#allocation2] sm:$0xff]
        %v605 = vld [vmem:[#allocation2 + $0x8] sm:$0xff]
        %v606 = vld [vmem:[#allocation2 + $0x10] sm:$0xff]
        %v607 = vld [vmem:[#allocation2 + $0x18] sm:$0xff]
        %v608 = vld [vmem:[#allocation2 + $0x20] sm:$0xff]
        %v609 = vld [vmem:[#allocation2 + $0x28] sm:$0xff]
        %v610 = vld [vmem:[#allocation2 + $0x30] sm:$0xff]
        %v611 = vld [vmem:[#allocation2 + $0x38] sm:$0xff]
        %612 = vmatpush.msra.mxu0 %v456
        %613 = vmatpush.msra.mxu0 %v454
        %614 = vmatpush.msra.mxu0 %v452
        %615 = vmatpush.msra.mxu0 %v450
        %616 = vmatpush.msra.mxu0 %v448
        %617 = vmatpush.msra.mxu0 %v446
        %618 = vmatpush.msra.mxu0 %v444
        %619 = vmatpush.msra.mxu0 %v442
        %620 = vmatpush.msra.mxu0 %v440
        %621 = vmatpush.msra.mxu0 %v438
        %622 = vmatpush.msra.mxu0 %v436
        %623 = vmatpush.msra.mxu0 %v434
        %624 = vmatpush.msra.mxu0 %v432
        %625 = vmatpush.msra.mxu0 %v430
        %626 = vmatpush.msra.mxu0 %v428
        %627 = vmatpush.msra.mxu0 %v426
        %628 = vmatmul.f32.gmra.mxu0 %v604
        %v629 = vpop.f32.mrf.mxu0
        %v630 = vadd.f32 0.0, %v629
        %631 = vmatmul.f32.gmra.mxu0 %v605
        %v632 = vpop.f32.mrf.mxu0
        %v633 = vadd.f32 0.0, %v632
        %634 = vmatmul.f32.gmra.mxu0 %v606
        %v635 = vpop.f32.mrf.mxu0
        %v636 = vadd.f32 0.0, %v635
        %637 = vmatmul.f32.gmra.mxu0 %v607
        %v638 = vpop.f32.mrf.mxu0
        %v639 = vadd.f32 0.0, %v638
        %640 = vmatmul.f32.gmra.mxu0 %v608
        %v641 = vpop.f32.mrf.mxu0
        %v642 = vadd.f32 0.0, %v641
        %643 = vmatmul.f32.gmra.mxu0 %v609
        %v644 = vpop.f32.mrf.mxu0
        %v645 = vadd.f32 0.0, %v644
        %646 = vmatmul.f32.gmra.mxu0 %v610
        %v647 = vpop.f32.mrf.mxu0
        %v648 = vadd.f32 0.0, %v647
        %649 = vmatmul.f32.gmra.mxu0 %v611
        %v650 = vpop.f32.mrf.mxu0
        %v651 = vadd.f32 0.0, %v650
        %652 = vdwg.mxu0
        %653 = vmatpush.msra.mxu0 %v457
        %654 = vmatpush.msra.mxu0 %v455
        %655 = vmatpush.msra.mxu0 %v453
        %656 = vmatpush.msra.mxu0 %v451
        %657 = vmatpush.msra.mxu0 %v449
        %658 = vmatpush.msra.mxu0 %v447
        %659 = vmatpush.msra.mxu0 %v445
        %660 = vmatpush.msra.mxu0 %v443
        %661 = vmatpush.msra.mxu0 %v441
        %662 = vmatpush.msra.mxu0 %v439
        %663 = vmatpush.msra.mxu0 %v437
        %664 = vmatpush.msra.mxu0 %v435
        %665 = vmatpush.msra.mxu0 %v433
        %666 = vmatpush.msra.mxu0 %v431
        %667 = vmatpush.msra.mxu0 %v429
        %668 = vmatpush.msra.mxu0 %v427
        %669 = vmatmul.f32.gmra.mxu0 %v604
        %v670 = vpop.f32.mrf.mxu0
        %v671 = vadd.f32 0.0, %v670
        %672 = vmatmul.f32.gmra.mxu0 %v605
        %v673 = vpop.f32.mrf.mxu0
        %v674 = vadd.f32 0.0, %v673
        %675 = vmatmul.f32.gmra.mxu0 %v606
        %v676 = vpop.f32.mrf.mxu0
        %v677 = vadd.f32 0.0, %v676
        %678 = vmatmul.f32.gmra.mxu0 %v607
        %v679 = vpop.f32.mrf.mxu0
        %v680 = vadd.f32 0.0, %v679
        %681 = vmatmul.f32.gmra.mxu0 %v608
        %v682 = vpop.f32.mrf.mxu0
        %v683 = vadd.f32 0.0, %v682
        %684 = vmatmul.f32.gmra.mxu0 %v609
        %v685 = vpop.f32.mrf.mxu0
        %v686 = vadd.f32 0.0, %v685
        %687 = vmatmul.f32.gmra.mxu0 %v610
        %v688 = vpop.f32.mrf.mxu0
        %v689 = vadd.f32 0.0, %v688
        %690 = vmatmul.f32.gmra.mxu0 %v611
        %v691 = vpop.f32.mrf.mxu0
        %v692 = vadd.f32 0.0, %v691
        %693 = vdwg.mxu0
        %v694 = vld [vmem:[%s3] sm:$0xff]
        %v695 = vld [vmem:[%s3 + $0x8] sm:$0xff]
        %v696 = vld [vmem:[%s3 + $0x10] sm:$0xff]
        %v697 = vld [vmem:[%s3 + $0x18] sm:$0xff]
        %v698 = vld [vmem:[%s3 + $0x20] sm:$0xff]
        %v699 = vld [vmem:[%s3 + $0x28] sm:$0xff]
        %v700 = vld [vmem:[%s3 + $0x30] sm:$0xff]
        %v701 = vld [vmem:[%s3 + $0x38] sm:$0xff]
        %v702 = vld [vmem:[%s3 + $0x40] sm:$0xff]
        %v703 = vld [vmem:[%s3 + $0x48] sm:$0xff]
        %v704 = vld [vmem:[%s3 + $0x50] sm:$0xff]
        %v705 = vld [vmem:[%s3 + $0x58] sm:$0xff]
        %v706 = vld [vmem:[%s3 + $0x60] sm:$0xff]
        %v707 = vld [vmem:[%s3 + $0x68] sm:$0xff]
        %v708 = vld [vmem:[%s3 + $0x70] sm:$0xff]
        %v709 = vld [vmem:[%s3 + $0x78] sm:$0xff]
        %710 = vmatpush.msra.mxu0 %v570
        %711 = vmatpush.msra.mxu0 %v568
        %712 = vmatpush.msra.mxu0 %v566
        %713 = vmatpush.msra.mxu0 %v564
        %714 = vmatpush.msra.mxu0 %v562
        %715 = vmatpush.msra.mxu0 %v560
        %716 = vmatpush.msra.mxu0 %v558
        %717 = vmatpush.msra.mxu0 %v556
        %718 = vmatpush.msra.mxu0 %v554
        %719 = vmatpush.msra.mxu0 %v552
        %720 = vmatpush.msra.mxu0 %v550
        %721 = vmatpush.msra.mxu0 %v548
        %722 = vmatpush.msra.mxu0 %v546
        %723 = vmatpush.msra.mxu0 %v544
        %724 = vmatpush.msra.mxu0 %v542
        %725 = vmatpush.msra.mxu0 %v540
        %726 = vmatmul.f32.gmra.mxu0 %v694
        %v727 = vpop.f32.mrf.mxu0
        %v728 = vadd.f32 0.0, %v727
        %729 = vmatmul.f32.gmra.mxu0 %v696
        %v730 = vpop.f32.mrf.mxu0
        %v731 = vadd.f32 0.0, %v730
        %732 = vmatmul.f32.gmra.mxu0 %v698
        %v733 = vpop.f32.mrf.mxu0
        %v734 = vadd.f32 0.0, %v733
        %735 = vmatmul.f32.gmra.mxu0 %v700
        %v736 = vpop.f32.mrf.mxu0
        %v737 = vadd.f32 0.0, %v736
        %738 = vmatmul.f32.gmra.mxu0 %v702
        %v739 = vpop.f32.mrf.mxu0
        %v740 = vadd.f32 0.0, %v739
        %741 = vmatmul.f32.gmra.mxu0 %v704
        %v742 = vpop.f32.mrf.mxu0
        %v743 = vadd.f32 0.0, %v742
        %744 = vmatmul.f32.gmra.mxu0 %v706
        %v745 = vpop.f32.mrf.mxu0
        %v746 = vadd.f32 0.0, %v745
        %747 = vmatmul.f32.gmra.mxu0 %v708
        %v748 = vpop.f32.mrf.mxu0
        %v749 = vadd.f32 0.0, %v748
        %750 = vdwg.mxu0
        %751 = vmatpush.msra.mxu0 %v602
        %752 = vmatpush.msra.mxu0 %v600
        %753 = vmatpush.msra.mxu0 %v598
        %754 = vmatpush.msra.mxu0 %v596
        %755 = vmatpush.msra.mxu0 %v594
        %756 = vmatpush.msra.mxu0 %v592
        %757 = vmatpush.msra.mxu0 %v590
        %758 = vmatpush.msra.mxu0 %v588
        %759 = vmatpush.msra.mxu0 %v586
        %760 = vmatpush.msra.mxu0 %v584
        %761 = vmatpush.msra.mxu0 %v582
        %762 = vmatpush.msra.mxu0 %v580
        %763 = vmatpush.msra.mxu0 %v578
        %764 = vmatpush.msra.mxu0 %v576
        %765 = vmatpush.msra.mxu0 %v574
        %766 = vmatpush.msra.mxu0 %v572
        %767 = vmatmul.f32.gmra.mxu0 %v695
        %v768 = vpop.f32.mrf.mxu0
        %v769 = vadd.f32 %v728, %v768
        %770 = vmatmul.f32.gmra.mxu0 %v697
        %v771 = vpop.f32.mrf.mxu0
        %v772 = vadd.f32 %v731, %v771
        %773 = vmatmul.f32.gmra.mxu0 %v699
        %v774 = vpop.f32.mrf.mxu0
        %v775 = vadd.f32 %v734, %v774
        %776 = vmatmul.f32.gmra.mxu0 %v701
        %v777 = vpop.f32.mrf.mxu0
        %v778 = vadd.f32 %v737, %v777
        %779 = vmatmul.f32.gmra.mxu0 %v703
        %v780 = vpop.f32.mrf.mxu0
        %v781 = vadd.f32 %v740, %v780
        %782 = vmatmul.f32.gmra.mxu0 %v705
        %v783 = vpop.f32.mrf.mxu0
        %v784 = vadd.f32 %v743, %v783
        %785 = vmatmul.f32.gmra.mxu0 %v707
        %v786 = vpop.f32.mrf.mxu0
        %v787 = vadd.f32 %v746, %v786
        %788 = vmatmul.f32.gmra.mxu0 %v709
        %v789 = vpop.f32.mrf.mxu0
        %v790 = vadd.f32 %v749, %v789
        %791 = vdwg.mxu0
        %792 = vmatpush.msra.mxu0 %v571
        %793 = vmatpush.msra.mxu0 %v569
        %794 = vmatpush.msra.mxu0 %v567
        %795 = vmatpush.msra.mxu0 %v565
        %796 = vmatpush.msra.mxu0 %v563
        %797 = vmatpush.msra.mxu0 %v561
        %798 = vmatpush.msra.mxu0 %v559
        %799 = vmatpush.msra.mxu0 %v557
        %800 = vmatpush.msra.mxu0 %v555
        %801 = vmatpush.msra.mxu0 %v553
        %802 = vmatpush.msra.mxu0 %v551
        %803 = vmatpush.msra.mxu0 %v549
        %804 = vmatpush.msra.mxu0 %v547
        %805 = vmatpush.msra.mxu0 %v545
        %806 = vmatpush.msra.mxu0 %v543
        %807 = vmatpush.msra.mxu0 %v541
        %808 = vmatmul.f32.gmra.mxu0 %v694
        %v809 = vpop.f32.mrf.mxu0
        %v810 = vadd.f32 0.0, %v809
        %811 = vmatmul.f32.gmra.mxu0 %v696
        %v812 = vpop.f32.mrf.mxu0
        %v813 = vadd.f32 0.0, %v812
        %814 = vmatmul.f32.gmra.mxu0 %v698
        %v815 = vpop.f32.mrf.mxu0
        %v816 = vadd.f32 0.0, %v815
        %817 = vmatmul.f32.gmra.mxu0 %v700
        %v818 = vpop.f32.mrf.mxu0
        %v819 = vadd.f32 0.0, %v818
        %820 = vmatmul.f32.gmra.mxu0 %v702
        %v821 = vpop.f32.mrf.mxu0
        %v822 = vadd.f32 0.0, %v821
        %823 = vmatmul.f32.gmra.mxu0 %v704
        %v824 = vpop.f32.mrf.mxu0
        %v825 = vadd.f32 0.0, %v824
        %826 = vmatmul.f32.gmra.mxu0 %v706
        %v827 = vpop.f32.mrf.mxu0
        %v828 = vadd.f32 0.0, %v827
        %829 = vmatmul.f32.gmra.mxu0 %v708
        %v830 = vpop.f32.mrf.mxu0
        %v831 = vadd.f32 0.0, %v830
        %832 = vdwg.mxu0
        %833 = vmatpush.msra.mxu0 %v603
        %834 = vmatpush.msra.mxu0 %v601
        %835 = vmatpush.msra.mxu0 %v599
        %836 = vmatpush.msra.mxu0 %v597
        %837 = vmatpush.msra.mxu0 %v595
        %838 = vmatpush.msra.mxu0 %v593
        %839 = vmatpush.msra.mxu0 %v591
        %840 = vmatpush.msra.mxu0 %v589
        %841 = vmatpush.msra.mxu0 %v587
        %842 = vmatpush.msra.mxu0 %v585
        %843 = vmatpush.msra.mxu0 %v583
        %844 = vmatpush.msra.mxu0 %v581
        %845 = vmatpush.msra.mxu0 %v579
        %846 = vmatpush.msra.mxu0 %v577
        %847 = vmatpush.msra.mxu0 %v575
        %848 = vmatpush.msra.mxu0 %v573
        %849 = vmatmul.f32.gmra.mxu0 %v695
        %v850 = vpop.f32.mrf.mxu0
        %v851 = vadd.f32 %v810, %v850
        %852 = vmatmul.f32.gmra.mxu0 %v697
        %v853 = vpop.f32.mrf.mxu0
        %v854 = vadd.f32 %v813, %v853
        %855 = vmatmul.f32.gmra.mxu0 %v699
        %v856 = vpop.f32.mrf.mxu0
        %v857 = vadd.f32 %v816, %v856
        %858 = vmatmul.f32.gmra.mxu0 %v701
        %v859 = vpop.f32.mrf.mxu0
        %v860 = vadd.f32 %v819, %v859
        %861 = vmatmul.f32.gmra.mxu0 %v703
        %v862 = vpop.f32.mrf.mxu0
        %v863 = vadd.f32 %v822, %v862
        %864 = vmatmul.f32.gmra.mxu0 %v705
        %v865 = vpop.f32.mrf.mxu0
        %v866 = vadd.f32 %v825, %v865
        %867 = vmatmul.f32.gmra.mxu0 %v707
        %v868 = vpop.f32.mrf.mxu0
        %v869 = vadd.f32 %v828, %v868
        %870 = vmatmul.f32.gmra.mxu0 %v709
        %v871 = vpop.f32.mrf.mxu0
        %v872 = vadd.f32 %v831, %v871
        %873 = vdwg.mxu0
        %v874 = vld [vmem:[%s7] sm:$0xff]
        %v875 = vld [vmem:[%s7 + $0x8] sm:$0xff]
        %v876 = vld [vmem:[%s7 + $0x10] sm:$0xff]
        %v877 = vld [vmem:[%s7 + $0x18] sm:$0xff]
        %v878 = vld [vmem:[%s7 + $0x20] sm:$0xff]
        %v879 = vld [vmem:[%s7 + $0x28] sm:$0xff]
        %v880 = vld [vmem:[%s7 + $0x30] sm:$0xff]
        %v881 = vld [vmem:[%s7 + $0x38] sm:$0xff]
        %v882 = vld [vmem:[%s7 + $0x40] sm:$0xff]
        %v883 = vld [vmem:[%s7 + $0x48] sm:$0xff]
        %v884 = vld [vmem:[%s7 + $0x50] sm:$0xff]
        %v885 = vld [vmem:[%s7 + $0x58] sm:$0xff]
        %v886 = vld [vmem:[%s7 + $0x60] sm:$0xff]
        %v887 = vld [vmem:[%s7 + $0x68] sm:$0xff]
        %v888 = vld [vmem:[#allocation5] sm:$0xff]
        %v889 = vld [vmem:[#allocation5 + $0x8] sm:$0xff]
        %v890 = vld [vmem:[#allocation5 + $0x10] sm:$0xff]
        %v891 = vld [vmem:[#allocation5 + $0x18] sm:$0xff]
        %v892 = vld [vmem:[#allocation5 + $0x20] sm:$0xff]
        %v893 = vld [vmem:[#allocation5 + $0x28] sm:$0xff]
        %v894 = vld [vmem:[#allocation5 + $0x30] sm:$0xff]
        %v895 = vld [vmem:[#allocation5 + $0x38] sm:$0xff]
        %897 = vset.pattern.permute.xlu0 0
        %898 = vperm.xlu0 %897, %v874
        %v899 = vpop.permute.xlu0 %898
        %902 = vset.pattern.permute.xlu0 0
        %903 = vperm.xlu0 %902, %v875
        %v904 = vpop.permute.xlu0 %903
        %907 = vset.pattern.permute.xlu0 0
        %908 = vperm.xlu0 %907, %v876
        %v909 = vpop.permute.xlu0 %908
        %912 = vset.pattern.permute.xlu0 0
        %913 = vperm.xlu0 %912, %v877
        %v914 = vpop.permute.xlu0 %913
        %917 = vset.pattern.permute.xlu0 0
        %918 = vperm.xlu0 %917, %v878
        %v919 = vpop.permute.xlu0 %918
        %922 = vset.pattern.permute.xlu0 0
        %923 = vperm.xlu0 %922, %v879
        %v924 = vpop.permute.xlu0 %923
        %927 = vset.pattern.permute.xlu0 0
        %928 = vperm.xlu0 %927, %v880
        %v929 = vpop.permute.xlu0 %928
        %932 = vset.pattern.permute.xlu0 0
        %933 = vperm.xlu0 %932, %v881
        %v934 = vpop.permute.xlu0 %933
        %936 = vmatpush.msra.mxu0 %v790
        %937 = vmatpush.msra.mxu0 %v787
        %938 = vmatpush.msra.mxu0 %v784
        %939 = vmatpush.msra.mxu0 %v781
        %940 = vmatpush.msra.mxu0 %v778
        %941 = vmatpush.msra.mxu0 %v775
        %942 = vmatpush.msra.mxu0 %v772
        %943 = vmatpush.msra.mxu0 %v769
        %944 = vmatpush.msra.mxu0 %v651
        %945 = vmatpush.msra.mxu0 %v648
        %946 = vmatpush.msra.mxu0 %v645
        %947 = vmatpush.msra.mxu0 %v642
        %948 = vmatpush.msra.mxu0 %v639
        %949 = vmatpush.msra.mxu0 %v636
        %950 = vmatpush.msra.mxu0 %v633
        %951 = vmatpush.msra.mxu0 %v630
        %952 = vmatmul.f32.gmra.mxu0 %v888
        %v953 = vpop.f32.mrf.mxu0
        %v954 = vadd.f32 %v899, %v953
        %955 = vmatmul.f32.gmra.mxu0 %v889
        %v956 = vpop.f32.mrf.mxu0
        %v957 = vadd.f32 %v904, %v956
        %958 = vmatmul.f32.gmra.mxu0 %v890
        %v959 = vpop.f32.mrf.mxu0
        %v960 = vadd.f32 %v909, %v959
        %961 = vmatmul.f32.gmra.mxu0 %v891
        %v962 = vpop.f32.mrf.mxu0
        %v963 = vadd.f32 %v914, %v962
        %964 = vmatmul.f32.gmra.mxu0 %v892
        %v965 = vpop.f32.mrf.mxu0
        %v966 = vadd.f32 %v919, %v965
        %967 = vmatmul.f32.gmra.mxu0 %v893
        %v968 = vpop.f32.mrf.mxu0
        %v969 = vadd.f32 %v924, %v968
        %970 = vmatmul.f32.gmra.mxu0 %v894
        %v971 = vpop.f32.mrf.mxu0
        %v972 = vadd.f32 %v929, %v971
        %973 = vmatmul.f32.gmra.mxu0 %v895
        %v974 = vpop.f32.mrf.mxu0
        %v975 = vadd.f32 %v934, %v974
        %976 = vdwg.mxu0
        %977 = vmatpush.msra.mxu0 %v872
        %978 = vmatpush.msra.mxu0 %v869
        %979 = vmatpush.msra.mxu0 %v866
        %980 = vmatpush.msra.mxu0 %v863
        %981 = vmatpush.msra.mxu0 %v860
        %982 = vmatpush.msra.mxu0 %v857
        %983 = vmatpush.msra.mxu0 %v854
        %984 = vmatpush.msra.mxu0 %v851
        %985 = vmatpush.msra.mxu0 %v692
        %986 = vmatpush.msra.mxu0 %v689
        %987 = vmatpush.msra.mxu0 %v686
        %988 = vmatpush.msra.mxu0 %v683
        %989 = vmatpush.msra.mxu0 %v680
        %990 = vmatpush.msra.mxu0 %v677
        %991 = vmatpush.msra.mxu0 %v674
        %992 = vmatpush.msra.mxu0 %v671
        %993 = vmatmul.f32.gmra.mxu0 %v888
        %v994 = vpop.f32.mrf.mxu0
        %v995 = vadd.f32 %v899, %v994
        %996 = vmatmul.f32.gmra.mxu0 %v889
        %v997 = vpop.f32.mrf.mxu0
        %v998 = vadd.f32 %v904, %v997
        %999 = vmatmul.f32.gmra.mxu0 %v890
        %v1000 = vpop.f32.mrf.mxu0
        %v1001 = vadd.f32 %v909, %v1000
        %1002 = vmatmul.f32.gmra.mxu0 %v891
        %v1003 = vpop.f32.mrf.mxu0
        %v1004 = vadd.f32 %v914, %v1003
        %1005 = vmatmul.f32.gmra.mxu0 %v892
        %v1006 = vpop.f32.mrf.mxu0
        %v1007 = vadd.f32 %v919, %v1006
        %1008 = vmatmul.f32.gmra.mxu0 %v893
        %v1009 = vpop.f32.mrf.mxu0
        %v1010 = vadd.f32 %v924, %v1009
        %1011 = vmatmul.f32.gmra.mxu0 %v894
        %v1012 = vpop.f32.mrf.mxu0
        %v1013 = vadd.f32 %v929, %v1012
        %1014 = vmatmul.f32.gmra.mxu0 %v895
        %v1015 = vpop.f32.mrf.mxu0
        %v1016 = vadd.f32 %v934, %v1015
        %1017 = vdwg.mxu0
        %v1018 = vmax.f32 %v954, 0.0
        %v1019 = vmax.f32 %v995, 0.0
        %v1020 = vmax.f32 %v957, 0.0
        %v1021 = vmax.f32 %v998, 0.0
        %v1022 = vmax.f32 %v960, 0.0
        %v1023 = vmax.f32 %v1001, 0.0
        %v1024 = vmax.f32 %v963, 0.0
        %v1025 = vmax.f32 %v1004, 0.0
        %v1026 = vmax.f32 %v966, 0.0
        %v1027 = vmax.f32 %v1007, 0.0
        %v1028 = vmax.f32 %v969, 0.0
        %v1029 = vmax.f32 %v1010, 0.0
        %v1030 = vmax.f32 %v972, 0.0
        %v1031 = vmax.f32 %v1013, 0.0
        %v1032 = vmax.f32 %v975, 0.0
        %v1033 = vmax.f32 %v1016, 0.0
        %v1034 = vld [vmem:[#allocation7] sm:$0xff]
        %v1035 = vld [vmem:[#allocation7 + $0x8] sm:$0xff]
        %v1036 = vld [vmem:[#allocation7 + $0x10] sm:$0xff]
        %v1037 = vld [vmem:[#allocation7 + $0x18] sm:$0xff]
        %1039 = vset.pattern.permute.xlu0 0
        %1040 = vperm.xlu0 %1039, %v882
        %v1041 = vpop.permute.xlu0 %1040
        %1044 = vset.pattern.permute.xlu0 0
        %1045 = vperm.xlu0 %1044, %v883
        %v1046 = vpop.permute.xlu0 %1045
        %1049 = vset.pattern.permute.xlu0 0
        %1050 = vperm.xlu0 %1049, %v884
        %v1051 = vpop.permute.xlu0 %1050
        %1054 = vset.pattern.permute.xlu0 0
        %1055 = vperm.xlu0 %1054, %v885
        %v1056 = vpop.permute.xlu0 %1055
        %vm1058 = vcmask 523264
        %v1060 = vsel %vm1058, %v1034, 0
        %v1063 = vsel %vm1058, %v1035, 0
        %v1066 = vsel %vm1058, %v1036, 0
        %v1069 = vsel %vm1058, %v1037, 0
        %1071 = vmatpush.msra.mxu0 0.0
        %1072 = vmatpush.msra.mxu0 0.0
        %1073 = vmatpush.msra.mxu0 0.0
        %1074 = vmatpush.msra.mxu0 0.0
        %1075 = vmatpush.msra.mxu0 0.0
        %1076 = vmatpush.msra.mxu0 0.0
        %1077 = vmatpush.msra.mxu0 0.0
        %1078 = vmatpush.msra.mxu0 0.0
        %1079 = vmatpush.msra.mxu0 %v1032
        %1080 = vmatpush.msra.mxu0 %v1030
        %1081 = vmatpush.msra.mxu0 %v1028
        %1082 = vmatpush.msra.mxu0 %v1026
        %1083 = vmatpush.msra.mxu0 %v1024
        %1084 = vmatpush.msra.mxu0 %v1022
        %1085 = vmatpush.msra.mxu0 %v1020
        %1086 = vmatpush.msra.mxu0 %v1018
        %1087 = vmatmul.f32.gmra.mxu0 %v1060
        %v1088 = vpop.f32.mrf.mxu0
        %v1089 = vadd.f32 %v1041, %v1088
        %1090 = vmatmul.f32.gmra.mxu0 %v1063
        %v1091 = vpop.f32.mrf.mxu0
        %v1092 = vadd.f32 %v1046, %v1091
        %1093 = vmatmul.f32.gmra.mxu0 %v1066
        %v1094 = vpop.f32.mrf.mxu0
        %v1095 = vadd.f32 %v1051, %v1094
        %1096 = vmatmul.f32.gmra.mxu0 %v1069
        %v1097 = vpop.f32.mrf.mxu0
        %v1098 = vadd.f32 %v1056, %v1097
        %1099 = vdwg.mxu0
        %1100 = vmatpush.msra.mxu0 0.0
        %1101 = vmatpush.msra.mxu0 0.0
        %1102 = vmatpush.msra.mxu0 0.0
        %1103 = vmatpush.msra.mxu0 0.0
        %1104 = vmatpush.msra.mxu0 0.0
        %1105 = vmatpush.msra.mxu0 0.0
        %1106 = vmatpush.msra.mxu0 0.0
        %1107 = vmatpush.msra.mxu0 0.0
        %1108 = vmatpush.msra.mxu0 %v1033
        %1109 = vmatpush.msra.mxu0 %v1031
        %1110 = vmatpush.msra.mxu0 %v1029
        %1111 = vmatpush.msra.mxu0 %v1027
        %1112 = vmatpush.msra.mxu0 %v1025
        %1113 = vmatpush.msra.mxu0 %v1023
        %1114 = vmatpush.msra.mxu0 %v1021
        %1115 = vmatpush.msra.mxu0 %v1019
        %1116 = vmatmul.f32.gmra.mxu0 %v1060
        %v1117 = vpop.f32.mrf.mxu0
        %v1118 = vadd.f32 %v1041, %v1117
        %1119 = vmatmul.f32.gmra.mxu0 %v1063
        %v1120 = vpop.f32.mrf.mxu0
        %v1121 = vadd.f32 %v1046, %v1120
        %1122 = vmatmul.f32.gmra.mxu0 %v1066
        %v1123 = vpop.f32.mrf.mxu0
        %v1124 = vadd.f32 %v1051, %v1123
        %1125 = vmatmul.f32.gmra.mxu0 %v1069
        %v1126 = vpop.f32.mrf.mxu0
        %v1127 = vadd.f32 %v1056, %v1126
        %1128 = vdwg.mxu0
        %v1129 = vmax.f32 %v1089, 0.0
        %v1130 = vmax.f32 %v1118, 0.0
        %v1131 = vmax.f32 %v1092, 0.0
        %v1132 = vmax.f32 %v1121, 0.0
        %v1133 = vmax.f32 %v1095, 0.0
        %v1134 = vmax.f32 %v1124, 0.0
        %v1135 = vmax.f32 %v1098, 0.0
        %v1136 = vmax.f32 %v1127, 0.0
        %v1137 = vld [vmem:[%s6] sm:$0xff]
        %v1138 = vld [vmem:[%s6 + $0x8] sm:$0xff]
        %1140 = vset.pattern.permute.xlu0 0
        %1141 = vperm.xlu0 %1140, %v886
        %v1142 = vpop.permute.xlu0 %1141
        %1145 = vset.pattern.permute.xlu0 0
        %1146 = vperm.xlu0 %1145, %v887
        %v1147 = vpop.permute.xlu0 %1146
        %vm1149 = vcmask 261120
        %v1151 = vsel %vm1149, %v1137, 0
        %v1154 = vsel %vm1149, %v1138, 0
        %1156 = vmatpush.msra.mxu0 0.0
        %1157 = vmatpush.msra.mxu0 0.0
        %1158 = vmatpush.msra.mxu0 0.0
        %1159 = vmatpush.msra.mxu0 0.0
        %1160 = vmatpush.msra.mxu0 0.0
        %1161 = vmatpush.msra.mxu0 0.0
        %1162 = vmatpush.msra.mxu0 0.0
        %1163 = vmatpush.msra.mxu0 0.0
        %1164 = vmatpush.msra.mxu0 0.0
        %1165 = vmatpush.msra.mxu0 0.0
        %1166 = vmatpush.msra.mxu0 0.0
        %1167 = vmatpush.msra.mxu0 0.0
        %1168 = vmatpush.msra.mxu0 %v1135
        %1169 = vmatpush.msra.mxu0 %v1133
        %1170 = vmatpush.msra.mxu0 %v1131
        %1171 = vmatpush.msra.mxu0 %v1129
        %1172 = vmatmul.f32.gmra.mxu0 %v1151
        %v1173 = vpop.f32.mrf.mxu0
        %v1174 = vadd.f32 %v1142, %v1173
        %1175 = vmatmul.f32.gmra.mxu0 %v1154
        %v1176 = vpop.f32.mrf.mxu0
        %v1177 = vadd.f32 %v1147, %v1176
        %1178 = vdwg.mxu0
        %1179 = vmatpush.msra.mxu0 0.0
        %1180 = vmatpush.msra.mxu0 0.0
        %1181 = vmatpush.msra.mxu0 0.0
        %1182 = vmatpush.msra.mxu0 0.0
        %1183 = vmatpush.msra.mxu0 0.0
        %1184 = vmatpush.msra.mxu0 0.0
        %1185 = vmatpush.msra.mxu0 0.0
        %1186 = vmatpush.msra.mxu0 0.0
        %1187 = vmatpush.msra.mxu0 0.0
        %1188 = vmatpush.msra.mxu0 0.0
        %1189 = vmatpush.msra.mxu0 0.0
        %1190 = vmatpush.msra.mxu0 0.0
        %1191 = vmatpush.msra.mxu0 %v1136
        %1192 = vmatpush.msra.mxu0 %v1134
        %1193 = vmatpush.msra.mxu0 %v1132
        %1194 = vmatpush.msra.mxu0 %v1130
        %1195 = vmatmul.f32.gmra.mxu0 %v1151
        %v1196 = vpop.f32.mrf.mxu0
        %v1197 = vadd.f32 %v1142, %v1196
        %1198 = vmatmul.f32.gmra.mxu0 %v1154
        %v1199 = vpop.f32.mrf.mxu0
        %v1200 = vadd.f32 %v1147, %v1199
        %1201 = vdwg.mxu0
        %v1202 = vmul.f32 %v1174, %v1174
        %v1203 = vmul.f32 %v1197, %v1197
        %v1204 = vrot.slane %v1202, 4
        %v1205 = vadd.f32 %v1202, %v1204
        %v1206 = vrot.slane %v1205, 2
        %v1207 = vadd.f32 %v1205, %v1206
        %v1208 = vrot.slane %v1207, 1
        %v1209 = vadd.f32 %v1207, %v1208
        %v1210 = vrot.slane %v1203, 4
        %v1211 = vadd.f32 %v1203, %v1210
        %v1212 = vrot.slane %v1211, 2
        %v1213 = vadd.f32 %v1211, %v1212
        %v1214 = vrot.slane %v1213, 1
        %v1215 = vadd.f32 %v1213, %v1214
        %v1216 = vmul.f32 %v1177, %v1177
        %v1217 = vmul.f32 %v1200, %v1200
        %v1218 = vrot.slane %v1216, 4
        %v1219 = vadd.f32 %v1216, %v1218
        %v1220 = vrot.slane %v1219, 2
        %v1221 = vadd.f32 %v1219, %v1220
        %v1222 = vrot.slane %v1221, 1
        %v1223 = vadd.f32 %v1221, %v1222
        %v1224 = vrot.slane %v1217, 4
        %v1225 = vadd.f32 %v1217, %v1224
        %v1226 = vrot.slane %v1225, 2
        %v1227 = vadd.f32 %v1225, %v1226
        %v1228 = vrot.slane %v1227, 1
        %v1229 = vadd.f32 %v1227, %v1228
        %v1230 = vmax.f32 %v1209, 1e-24
        %v1231 = vmax.f32 %v1215, 1e-24
        %v1232 = vrsqrt.pop %v1230
        %v1233 = vmul.f32 %v1232, %v1230
        %v1234 = vmul.f32 %v1233, %v1232
        %v1235 = vmul.f32 0.5, %v1234
        %v1236 = vsub.f32 1.5, %v1235
        %v1237 = vmul.f32 %v1232, %v1236
        %vm1238 = vweird.f32 %v1230
        %vm1239 = vweird.f32 %v1232
        %vm1240 = vmor %vm1238, %vm1239
        %v1241 = vsel %vm1240, %v1232, %v1237
        %v1242 = vrsqrt.pop %v1231
        %v1243 = vmul.f32 %v1242, %v1231
        %v1244 = vmul.f32 %v1243, %v1242
        %v1245 = vmul.f32 0.5, %v1244
        %v1246 = vsub.f32 1.5, %v1245
        %v1247 = vmul.f32 %v1242, %v1246
        %vm1248 = vweird.f32 %v1231
        %vm1249 = vweird.f32 %v1242
        %vm1250 = vmor %vm1248, %vm1249
        %v1251 = vsel %vm1250, %v1242, %v1247
        %v1252 = vmax.f32 %v1223, 1e-24
        %v1253 = vmax.f32 %v1229, 1e-24
        %v1254 = vrsqrt.pop %v1252
        %v1255 = vmul.f32 %v1254, %v1252
        %v1256 = vmul.f32 %v1255, %v1254
        %v1257 = vmul.f32 0.5, %v1256
        %v1258 = vsub.f32 1.5, %v1257
        %v1259 = vmul.f32 %v1254, %v1258
        %vm1260 = vweird.f32 %v1252
        %vm1261 = vweird.f32 %v1254
        %vm1262 = vmor %vm1260, %vm1261
        %v1263 = vsel %vm1262, %v1254, %v1259
        %v1264 = vrsqrt.pop %v1253
        %v1265 = vmul.f32 %v1264, %v1253
        %v1266 = vmul.f32 %v1265, %v1264
        %v1267 = vmul.f32 0.5, %v1266
        %v1268 = vsub.f32 1.5, %v1267
        %v1269 = vmul.f32 %v1264, %v1268
        %vm1270 = vweird.f32 %v1253
        %vm1271 = vweird.f32 %v1264
        %vm1272 = vmor %vm1270, %vm1271
        %v1273 = vsel %vm1272, %v1264, %v1269
        %v1274 = vmul.f32 %v1174, %v1177
        %v1275 = vmul.f32 %v1197, %v1200
        %v1276 = vrot.slane %v1274, 4
        %v1277 = vadd.f32 %v1274, %v1276
        %v1278 = vrot.slane %v1277, 2
        %v1279 = vadd.f32 %v1277, %v1278
        %v1280 = vrot.slane %v1279, 1
        %v1281 = vadd.f32 %v1279, %v1280
        %v1282 = vrot.slane %v1275, 4
        %v1283 = vadd.f32 %v1275, %v1282
        %v1284 = vrot.slane %v1283, 2
        %v1285 = vadd.f32 %v1283, %v1284
        %v1286 = vrot.slane %v1285, 1
        %v1287 = vadd.f32 %v1285, %v1286
        %v1288 = vmul.f32 %v1281, %v1241
        %v1289 = vmul.f32 %v1287, %v1251
        %v1290 = vmul.f32 %v1288, %v1263
        %v1291 = vmul.f32 %v1289, %v1273
        %v1292 = vmul.f32 %v1290, 0.5
        %v1293 = vmul.f32 %v1291, 0.5
        %v1294 = vtanh.pop %v1292
        %v1295 = vtanh.pop %v1293
        %v1296 = vadd.f32 %v1294, 1.0
        %v1297 = vadd.f32 %v1295, 1.0
        %v1298 = vmul.f32 %v1296, 0.5
        %v1299 = vmul.f32 %v1297, 0.5
        %v1302 = vrot.slane %v1299, 7
        %vm1303 = vcmask 1040384
        %v1304 = vsel %vm1303, %v1298, %v1302
        %v1306 = vlaneseq
        %vm1307 = vcmp.ge.s32.totalorder %v1306, 0
        %vm1308 = vcmp.lt.s32.totalorder %v1306, 256
        %vm1309 = vmand %vm1307, %vm1308
        %1310 = vst.msk [vmem:[%s361] sm:$0x3] %vm1309, %v1304
        %s1311 = sand.u32 %s210, 1
        %s1312 = scalar_lea.sflag [#allocation4], %s1311
        %s1313 = sand.u32 %s210, 1
        %s1314 = smul.addr %s1313, 2
        %s1315 = scalar_lea.vmem [#allocation8], %s1314
        // Predicated region
        $region65: #{dmf_forward.1} parent=51 // pred_check
          %p1316 = pneg %p220
        $region66: #{dmf_forward.1} parent=51 // pred_check_branch
          %1318 = sbr.rel (%p1316) target = $region68
        $region67: #{dmf_forward.1} parent=51 // pred_region
          %s1319 = smul.u32 2, %s24
          %1321 = vsyncadd %s1312, 0
          %s1322 = scalar_lea.hbm %s8, %s1319
          %s1324 = sshll.u32 %s1315, 4
          %s1325 = int_to_ptr.vmem [resolvable:$true] %s1324
          %s1326 = sshll.u32 %s1322, 4
          %s1327 = int_to_ptr.hbm [resolvable:$true] %s1326
          %1329 = dma.vmem_to_hbm [thread:$0]  %s1325, 32, %s1327, %s1312
        $region68: #{dmf_forward.1} parent=51 // pred_fallthru
          _
      $region52: #{dmf_forward.1} parent=5 // pred_fallthru
        _
      %p1330 = scmp.le.s32.totalorder 2, %s19
      // Predicated region
      $region69: #{dmf_forward.1} parent=5 // pred_check
        %p1331 = pneg %p1330
      $region70: #{dmf_forward.1} parent=5 // pred_check_branch
        %1333 = sbr.rel (%p1331) target = $region72
      $region71: #{dmf_forward.1} parent=5 // pred_region
        %s1334 = ssub.s32 %s19, 2
        // Predicated region
        $region73: #{dmf_forward.1} parent=71 // pred_check
          %p1335 = pneg %p226
        $region74: #{dmf_forward.1} parent=71 // pred_check_branch
          %1337 = sbr.rel (%p1335) target = $region76
        $region75: #{dmf_forward.1} parent=71 // pred_region
          %s1338 = sand.u32 %s211, 1
          %s1339 = scalar_lea.sflag [#allocation4], %s1338
          %s1340 = sand.u32 %s211, 1
          %s1341 = smul.addr %s1340, 2
          %s1342 = scalar_lea.vmem [#allocation8], %s1341
          %1344 = dma.done %s1339, 32
        $region76: #{dmf_forward.1} parent=71 // pred_fallthru
          _
      $region72: #{dmf_forward.1} parent=5 // pred_fallthru
        _
    $region6: #{dmf_forward.1} parent=1 // loop_footer
      %s23 = sadd.s32 1, %s19
    $region7: #{dmf_forward.1} parent=1 // loop_footer_branch
      %18 = sbr.rel target = $region3
    $region8: #{dmf_forward.1} parent=1 // loop_exit
      _
    %1345 = vsyncpa [#allocation3], 1
    %s1346 = scalar_lea.sflag [#allocation3], 1
    %1347 = vsyncpa %s1346, 1
    %1348 = vsyncpa [#allocation6], 1
    %1349 = vsyncpa [#allocation4], 1
    %s1350 = scalar_lea.sflag [#allocation4], 1
    %1351 = vsyncpa %s1350, 1

</llo_original>
